<compile_context>
chip_gen: v7x
topology: tpu7x:2x2x1
jax: 0.10.0
libtpu: 0.0.40
codegen_flags: <defaults>
</compile_context>

<pallas_src>
import jax
import jax.numpy as jnp
from jax.experimental import pallas as pl
from jax.experimental.pallas import tpu as pltpu

F32 = jnp.float32
BF16 = jnp.bfloat16


def _round_up(x, m):
    return (x + m - 1) // m * m


def _tpu_vmem_bytes():
    try:
        info = pltpu.get_tpu_info()
        for attr in ("vmem_capacity_bytes", "vmem_bytes", "vmem_size_bytes"):
            v = getattr(info, attr, None)
            if v:
                v = int(v)
                if v >= (16 << 20):
                    return v
    except Exception:
        pass
    return 64 << 20      # conservative (v7x-sized) fallback


_VMEM_BYTES = _tpu_vmem_bytes()
# Budget for the double-buffered bf16 lhs+rhs tiles of one K step
# (~28 MiB on 128 MiB v5e/v6e VMEM, ~21 MiB on 64 MiB v7x).
_TILE_BUDGET = max(8 << 20, min(_VMEM_BYTES // 3, 28 << 20))
_VMEM_LIMIT = int(min(_VMEM_BYTES * 3 // 4, 100 << 20))


# ---------------------------------------------------------------------------
# Pallas kernels
# ---------------------------------------------------------------------------
def _mm_kernel(p_ref, w_ref, o_ref, stats_ref, acc_ref):
    """Real matmul on augmented complex operands, single f32 VMEM accumulator.

    The last-K epilogue also emits per-i-tile column sums and sums of squares
    so the following batch-stat BN never re-reads the conv output from HBM.
    """
    k = pl.program_id(2)

    @pl.when(k == 0)
    def _():
        acc_ref[...] = jnp.zeros_like(acc_ref)

    acc_ref[...] += jnp.dot(p_ref[...], w_ref[...],
                            preferred_element_type=jnp.float32)

    @pl.when(k == pl.num_programs(2) - 1)
    def _():
        acc = acc_ref[...]
        o_ref[...] = acc.astype(o_ref.dtype)
        s1 = jnp.sum(acc, axis=0, keepdims=True)
        s2 = jnp.sum(acc * acc, axis=0, keepdims=True)
        pad = jnp.zeros((6, acc.shape[1]), jnp.float32)
        stats_ref[...] = jnp.concatenate([s1, s2, pad], axis=0)


def _prelu(x, a):
    return jnp.where(x >= 0, x, a * x)


def _bn_act_kernel(x_ref, s_ref, t_ref, a_ref, o_ref):
    """Fused folded-BN (per-channel scale/shift) + PReLU, bf16 in/out."""
    y = x_ref[...].astype(jnp.float32) * s_ref[...] + t_ref[...]
    o_ref[...] = _prelu(y, a_ref[...]).astype(o_ref.dtype)


def _bn_add_act_kernel(x_ref, r_ref, sx_ref, tx_ref, sr_ref, tr_ref, a_ref, o_ref):
    """Fused BN(conv2) + BN-scaled residual + PReLU, one pass, bf16 in/out."""
    y = (x_ref[...].astype(jnp.float32) * sx_ref[...] + tx_ref[...]
         + r_ref[...].astype(jnp.float32) * sr_ref[...] + tr_ref[...])
    o_ref[...] = _prelu(y, a_ref[...]).astype(o_ref.dtype)


def _cmaxpool_kernel(pr_ref, pi_ref, o_ref):
    """Magnitude-based complex max pool; lane-dense combined [real|imag] output."""
    kk = pr_ref.shape[1]
    br = pr_ref[:, 0, :].astype(jnp.float32)
    bi = pi_ref[:, 0, :].astype(jnp.float32)
    bm = br * br + bi * bi
    for t in range(1, kk):
        r = pr_ref[:, t, :].astype(jnp.float32)
        im = pi_ref[:, t, :].astype(jnp.float32)
        m = r * r + im * im
        take = m > bm
        bm = jnp.where(take, m, bm)
        br = jnp.where(take, r, br)
        bi = jnp.where(take, im, bi)
    o_ref[...] = jnp.concatenate([br, bi], axis=-1).astype(o_ref.dtype)


def _cavgpool_kernel(x_ref, o_ref):
    o_ref[...] = jnp.mean(x_ref[...].astype(jnp.float32), axis=1)


# ---------------------------------------------------------------------------
# pallas_call wrappers
# ---------------------------------------------------------------------------
def _matmul_tiles(M, N2, K):
    tm = 256 if M >= 256 else _round_up(max(M, 1), 16)
    Np1 = _round_up(N2, 128)
    # small-M layers: tn=128 maximizes parallel j steps (2-TC v7x utilization);
    # large-M layers: tn=256 cuts lhs re-reads.
    tn = 128 if (M < 256 or Np1 < 256) else 256
    Kp1 = _round_up(K, 128)
    per_k = 2 * 2 * (tm + tn)            # double-buffered bf16 bytes per unit K
    if per_k * Kp1 <= _TILE_BUDGET:
        tk = Kp1                         # single K step: no accumulator round trips
    else:
        tk_cap = max(512, (_TILE_BUDGET // per_k) // 128 * 128)
        nsteps = -(-Kp1 // tk_cap)
        tk = _round_up(-(-Kp1 // nsteps), 128)
    Mp = _round_up(M, tm)
    Np = _round_up(Np1, tn)
    Kp = _round_up(Kp1, tk)
    return tm, tn, tk, Mp, Np, Kp


def aug_matmul(lhs, w_aug, out_dtype=BF16):
    """(M,K) augmented patches @ (K,N2) augmented complex weights.

    Output columns are [real outputs | imag outputs].  Also returns the
    (column sum, column sum-of-squares) over the M rows (f32, length N2),
    computed in-kernel from the f32 accumulator.
    """
    M, K = lhs.shape
    N2 = w_aug.shape[1]
    tm, tn, tk, Mp, Np, Kp = _matmul_tiles(M, N2, K)

    lhs = lhs if lhs.dtype == BF16 else lhs.astype(BF16)
    if (Mp, Kp) != (M, K):
        lhs = jnp.pad(lhs, ((0, Mp - M), (0, Kp - K)))
    w = w_aug if w_aug.dtype == BF16 else w_aug.astype(BF16)
    if (Kp, Np) != w.shape:
        w = jnp.pad(w, ((0, Kp - K), (0, Np - N2)))

    gi, gj, gk = Mp // tm, Np // tn, Kp // tk
    out_bytes = jnp.dtype(out_dtype).itemsize
    bytes_accessed = (2 * Mp * Kp * gj + 2 * Kp * Np
                      + Mp * Np * out_bytes + 8 * gi * Np * 4)

    out, stats = pl.pallas_call(
        _mm_kernel,
        out_shape=(jax.ShapeDtypeStruct((Mp, Np), out_dtype),
                   jax.ShapeDtypeStruct((8 * gi, Np), F32)),
        grid=(gi, gj, gk),
        in_specs=[pl.BlockSpec((tm, tk), lambda i, j, k: (i, k)),
                  pl.BlockSpec((tk, tn), lambda i, j, k: (k, j))],
        out_specs=(pl.BlockSpec((tm, tn), lambda i, j, k: (i, j)),
                   pl.BlockSpec((8, tn), lambda i, j, k: (i, j))),
        scratch_shapes=[pltpu.VMEM((tm, tn), F32)],
        compiler_params=pltpu.CompilerParams(
            dimension_semantics=("parallel", "parallel", "arbitrary"),
            vmem_limit_bytes=_VMEM_LIMIT),
        cost_estimate=pl.CostEstimate(flops=2 * Mp * Np * Kp, transcendentals=0,
                                      bytes_accessed=bytes_accessed),
    )(lhs, w)

    st = stats.reshape(gi, 8, Np)
    col_sum = jnp.sum(st[:, 0, :], axis=0)[:N2]
    col_sumsq = jnp.sum(st[:, 1, :], axis=0)[:N2]
    return out, (col_sum, col_sumsq)


def _pick_rows(rows, target):
    if rows <= target:
        return rows
    t = (min(target, rows) // 8) * 8
    while t >= 8:
        if rows % t == 0:
            return t
        t -= 8
    return rows


def _rowwise(kernel, row_args, chan_args, out_dtype=BF16):
    """Row-tiled elementwise pass over combined (rows, 2C) activations (2C>=128,
    so every store is lane-dense); small per-channel params replicated per tile."""
    rows, c2 = row_args[0].shape
    rp = _round_up(rows, 8)
    if rp != rows:
        row_args = [jnp.pad(a, ((0, rp - rows), (0, 0))) for a in row_args]
    target = max(8, min(2048, (1 << 20) // (c2 * 2)))     # ~1 MiB bf16 blocks
    tr = _pick_rows(rp, target)
    in_specs = ([pl.BlockSpec((tr, c2), lambda i: (i, 0)) for _ in row_args] +
                [pl.BlockSpec(a.shape, lambda i: (0, 0)) for a in chan_args])
    out = pl.pallas_call(
        kernel,
        out_shape=jax.ShapeDtypeStruct((rp, c2), out_dtype),
        grid=(rp // tr,),
        in_specs=in_specs,
        out_specs=pl.BlockSpec((tr, c2), lambda i: (i, 0)),
        compiler_params=pltpu.CompilerParams(dimension_semantics=("parallel",)),
    )(*row_args, *chan_args)
    return out if rp == rows else out[:rows]


# ---------------------------------------------------------------------------
# JAX glue (im2col / BN fold / layout) around the kernels
# ---------------------------------------------------------------------------
def _im2col(x, k, stride, padding):
    """x: (N,H,W,C) -> patches (N,Ho,Wo,k*k,C).
    TODO(synk): patches are still materialized in HBM (bf16); an in-kernel
    gather of the overlapping windows (tap folded into the K grid axis) is the
    remaining DMA optimization for the 7x7 stem and the maxpool."""
    N, H, W, C = x.shape
    Ho = (H + 2 * padding - k) // stride + 1
    Wo = (W + 2 * padding - k) // stride + 1
    if padding:
        x = jnp.pad(x, ((0, 0), (padding, padding), (padding, padding), (0, 0)))
    cols = []
    for i in range(k):
        for j in range(k):
            cols.append(x[:, i:i + (Ho - 1) * stride + 1:stride,
                          j:j + (Wo - 1) * stride + 1:stride, :])
    return jnp.stack(cols, axis=3), (N, Ho, Wo)


def complex_conv2d(x, p, stride, padding):
    """x: (N,H,W,2Cin) combined bf16 -> flat (Mp, 2Cout) bf16 + BN stats + dims.
    Conv bias is intentionally NOT added: every conv here is followed by
    batch-stat BN whose mean subtraction cancels it exactly (fc handled apart).
    TODO(synk): a Gauss 3-multiply path would save 25% MXU work for cout>=128
    layers on v5e; omitted to keep a single lane-dense combined layout."""
    k = p['k']
    x = x if x.dtype == BF16 else x.astype(BF16)
    patches, (N, Ho, Wo) = _im2col(x, k, stride, padding)
    M = N * Ho * Wo
    P = patches.reshape(M, k * k * x.shape[-1])
    y, stats = aug_matmul(P, p['w_aug'], out_dtype=BF16)
    n2 = p['w_aug'].shape[1]
    if y.shape[1] != n2:
        y = y[:, :n2]
    return y, stats, (N, Ho, Wo, M)


def _bn_fold(stats, count, gamma, beta, eps=1e-5):
    """Fold naive batch-stat BN into per-channel scale/shift from in-kernel
    column sums / sums-of-squares (E[x^2] - E[x]^2 form, f32)."""
    s, ss = stats
    inv = 1.0 / float(count)
    mean = s * inv
    var = jnp.maximum(ss * inv - mean * mean, 0.0)
    scale = gamma.reshape(-1) * jax.lax.rsqrt(var + eps)
    shift = beta.reshape(-1) - mean * scale
    return scale.reshape(1, -1), shift.reshape(1, -1)


def _alpha_cat(act_p, cout):
    return jnp.concatenate([jnp.broadcast_to(act_p['ar'], (1, cout)),
                            jnp.broadcast_to(act_p['ai'], (1, cout))],
                           axis=1).astype(F32)


def conv_bn_act(x, conv_p, bn_p, act_p, stride, padding):
    y, stats, (N, Ho, Wo, M) = complex_conv2d(x, conv_p, stride, padding)
    scale, shift = _bn_fold(stats, M, bn_p['gamma'], bn_p['beta'])
    a_cat = _alpha_cat(act_p, conv_p['cout'])
    y = _rowwise(_bn_act_kernel, [y], [scale, shift, a_cat])
    if y.shape[0] != M:
        y = y[:M]
    return y.reshape(N, Ho, Wo, 2 * conv_p['cout'])


def complex_maxpool(x, k, stride, padding):
    """x: (N,H,W,2C) combined; selects the window element with max |z|^2."""
    c2 = x.shape[-1]
    c = c2 // 2
    xr, xi = x[..., :c], x[..., c:]
    pr, (N, Ho, Wo) = _im2col(xr, k, stride, padding)
    pi, _ = _im2col(xi, k, stride, padding)
    M = N * Ho * Wo
    kk = k * k
    pr = pr.reshape(M, kk, c)
    pi = pi.reshape(M, kk, c)
    tm = min(512, _round_up(M, 8))
    Mp = _round_up(M, tm)
    if Mp != M:
        pr = jnp.pad(pr, ((0, Mp - M), (0, 0), (0, 0)))
        pi = jnp.pad(pi, ((0, Mp - M), (0, 0), (0, 0)))
    # zero pads have |z|^2 = 0: they can only tie with exact zeros -> same output.
    out = pl.pallas_call(
        _cmaxpool_kernel,
        out_shape=jax.ShapeDtypeStruct((Mp, c2), BF16),
        grid=(Mp // tm,),
        in_specs=[pl.BlockSpec((tm, kk, c), lambda i: (i, 0, 0)),
                  pl.BlockSpec((tm, kk, c), lambda i: (i, 0, 0))],
        out_specs=pl.BlockSpec((tm, c2), lambda i: (i, 0)),
        compiler_params=pltpu.CompilerParams(dimension_semantics=("parallel",)),
    )(pr, pi)
    return out[:M].reshape(N, Ho, Wo, c2)


def complex_avgpool(x):
    # TODO(synk): whole-array VMEM block; add a grid for large spatial/batch.
    N, H, W, c2 = x.shape
    return pl.pallas_call(
        _cavgpool_kernel,
        out_shape=jax.ShapeDtypeStruct((N, c2), F32),
        in_specs=[pl.BlockSpec(memory_space=pltpu.MemorySpace.VMEM)],
        out_specs=pl.BlockSpec(memory_space=pltpu.MemorySpace.VMEM),
    )(x.reshape(N, H * W, c2))


def complex_fc(x_flat, p):
    """x_flat: (B, 2*Cin) f32 combined -> (yr, yi) with complex bias."""
    B = x_flat.shape[0]
    n_cls = p['cout']
    y, _ = aug_matmul(x_flat.astype(BF16), p['w_aug'], out_dtype=F32)
    yr = y[:B, :n_cls] + p['br'][None, :]
    yi = y[:B, n_cls:2 * n_cls] + p['bi'][None, :]
    return yr, yi


# ---------------------------------------------------------------------------
# Parameters (deterministic, synthetic)
# ---------------------------------------------------------------------------
def conv_params(key, cin, cout, k):
    k1, k2, k3, k4 = jax.random.split(key, 4)
    fan_in = cin * k * k
    std = 1.0 / (fan_in ** 0.5)
    wr = jax.random.normal(k1, (k, k, cin, cout), F32) * std
    wi = jax.random.normal(k2, (k, k, cin, cout), F32) * std
    # Augmented real weight matching im2col of a combined [real|imag] activation:
    # rows (tap, [real chans ; imag chans]) -> cols [real outs | imag outs].
    top = jnp.concatenate([wr, wi], axis=-1)      # real input channels
    bot = jnp.concatenate([-wi, wr], axis=-1)     # imag input channels
    w_aug = jnp.concatenate([top, bot], axis=2).reshape(
        k * k * 2 * cin, 2 * cout).astype(BF16)
    br = jax.random.normal(k3, (cout,), F32) * std
    bi = jax.random.normal(k4, (cout,), F32) * std
    return dict(w_aug=w_aug, br=br, bi=bi, k=k, cout=cout)


def bn_params(c):
    # gamma/beta concatenated as [real | imag] per channel.
    return dict(gamma=jnp.ones((1, 2 * c), F32), beta=jnp.zeros((1, 2 * c), F32))


def prelu_params():
    return dict(ar=jnp.full((1, 1), 0.25, F32), ai=jnp.full((1, 1), 0.25, F32))


def block_params(key, inplanes, planes, stride):
    ks = jax.random.split(key, 3)
    p = dict(conv1=conv_params(ks[0], inplanes, planes, 3),
             bn1=bn_params(planes),
             conv2=conv_params(ks[1], planes, planes, 3),
             bn2=bn_params(planes),
             prelu=prelu_params(),
             stride=stride)
    if stride != 1 or inplanes != planes:
        p['down_conv'] = conv_params(ks[2], inplanes, planes, 1)
        p['down_bn'] = bn_params(planes)
    return p


def make_resnet_params(key, layers=(1, 1, 1, 1), num_classes=10):
    keys = iter(jax.random.split(key, 64))
    params = {'conv1': conv_params(next(keys), 3, 64, 7),
              'bn1': bn_params(64),
              'prelu': prelu_params()}
    inplanes = 64
    for li, (planes, nblocks, stride) in enumerate(
            zip((64, 128, 256, 512), layers, (1, 2, 2, 2)), start=1):
        blocks = []
        for b in range(nblocks):
            s = stride if b == 0 else 1
            blocks.append(block_params(next(keys), inplanes, planes, s))
            inplanes = planes
        params[f'layer{li}'] = blocks
    params['fc'] = conv_params(next(keys), 512, num_classes, 1)
    return params


# ---------------------------------------------------------------------------
# Forward pass
# ---------------------------------------------------------------------------
def basic_block_forward(x, p):
    cout = p['conv1']['cout']
    h = conv_bn_act(x, p['conv1'], p['bn1'], p['prelu'],
                    stride=p['stride'], padding=1)
    y, stats2, (N, Ho, Wo, M) = complex_conv2d(h, p['conv2'], stride=1, padding=1)
    s2, t2 = _bn_fold(stats2, M, p['bn2']['gamma'], p['bn2']['beta'])
    Mp = y.shape[0]

    if 'down_conv' in p:
        r, stats_d, _ = complex_conv2d(x, p['down_conv'],
                                       stride=p['stride'], padding=0)
        sd, td = _bn_fold(stats_d, M, p['down_bn']['gamma'], p['down_bn']['beta'])
        if r.shape[0] > Mp:
            r = r[:Mp]
        elif r.shape[0] < Mp:
            r = jnp.pad(r, ((0, Mp - r.shape[0]), (0, 0)))
    else:
        r = x.reshape(M, 2 * cout)
        if Mp != M:
            r = jnp.pad(r, ((0, Mp - M), (0, 0)))
        sd = jnp.ones((1, 2 * cout), F32)
        td = jnp.zeros((1, 2 * cout), F32)

    a_cat = _alpha_cat(p['prelu'], cout)
    y = _rowwise(_bn_add_act_kernel, [y, r], [s2, t2, sd, td, a_cat])
    if y.shape[0] != M:
        y = y[:M]
    return y.reshape(N, Ho, Wo, 2 * cout)


def resnet_forward(params, x_complex):
    # x_complex: (N, 3, H, W) complex64 (NCHW, matching the PyTorch module).
    xr = jnp.real(x_complex).astype(F32).transpose(0, 2, 3, 1)
    xi = jnp.imag(x_complex).astype(F32).transpose(0, 2, 3, 1)
    x = jnp.concatenate([xr, xi], axis=-1).astype(BF16)   # (N, H, W, 2*3)

    x = conv_bn_act(x, params['conv1'], params['bn1'], params['prelu'],
                    stride=2, padding=3)
    x = complex_maxpool(x, k=3, stride=2, padding=1)

    for name in ('layer1', 'layer2', 'layer3', 'layer4'):
        for blk in params[name]:
            x = basic_block_forward(x, blk)

    avg = complex_avgpool(x)                               # (N, 2*512) f32
    yr, yi = complex_fc(avg, params['fc'])
    out = jax.lax.complex(yr, yi)                          # (N, num_classes)
    n, c = out.shape
    # NOTE: ComplexToFloat is defined in the module but never used in forward.
    return out.reshape(n, c, 1, 1)                         # NCHW complex64


if __name__ == "__main__":
    key = jax.random.PRNGKey(0)
    kx, kp = jax.random.split(key)
    kr, ki = jax.random.split(kx)
    x = (jax.random.normal(kr, (2, 3, 32, 32), F32)
         + 1j * jax.random.normal(ki, (2, 3, 32, 32), F32)).astype(jnp.complex64)

    params = make_resnet_params(kp, layers=(1, 1, 1, 1), num_classes=10)
    out = resnet_forward(params, x)
    out = jax.block_until_ready(out)
    assert out.shape == (2, 10, 1, 1) and out.dtype == jnp.complex64
    assert bool(jnp.all(jnp.isfinite(jnp.real(out)))
                & jnp.all(jnp.isfinite(jnp.imag(out))))
    print("KERNEL_OK")
</pallas_src>

<mosaic_0001>
module attributes {stable_mosaic.version = 11 : i64} {
  func.func @_mm_kernel(%arg0: i32, %arg1: i32, %arg2: i32, %arg3: memref<256x384xbf16, #tpu.memory_space<vmem>>, %arg4: memref<384x128xbf16, #tpu.memory_space<vmem>>, %arg5: memref<256x128xbf16, #tpu.memory_space<vmem>>, %arg6: memref<8x128xf32, #tpu.memory_space<vmem>>, %arg7: memref<256x128xf32, #tpu.memory_space<vmem>>) attributes {dimension_semantics = [#tpu.dimension_semantics<parallel>, #tpu.dimension_semantics<parallel>, #tpu.dimension_semantics<arbitrary>], iteration_bounds = array<i64: 2, 1, 1>, scalar_prefetch = 0 : i64, scratch_operands = 1 : i64, tpu.core_type = #tpu.core_type<tc>, window_params = [{transform_indices = @transform_0, window_bounds = array<i64: 256, 384>}, {transform_indices = @transform_1, window_bounds = array<i64: 384, 128>}, {transform_indices = @transform_2, window_bounds = array<i64: 256, 128>}, {transform_indices = @transform_3, window_bounds = array<i64: 8, 128>}]} {
    %c0_i32 = arith.constant 0 : i32
    %0 = arith.cmpi eq, %arg2, %c0_i32 : i32
    %1 = arith.extui %0 : i1 to i32
    %c0_i32_0 = arith.constant 0 : i32
    %2 = arith.cmpi ne, %1, %c0_i32_0 : i32
    scf.if %2 {
      %cst_10 = arith.constant 0.000000e+00 : f32
      %12 = vector.broadcast %cst_10 : f32 to vector<256x128xf32>
      %c0_11 = arith.constant 0 : index
      %c0_12 = arith.constant 0 : index
      %13 = vector.load %arg7[%c0_11, %c0_12] : memref<256x128xf32, #tpu.memory_space<vmem>>, vector<256x128xf32>
      tpu.vector_store %arg7[%c0_11, %c0_12], %12 {strides = array<i32>} : memref<256x128xf32, #tpu.memory_space<vmem>>, vector<256x128xf32>,
    } else {
    }
    %c0 = arith.constant 0 : index
    %c0_1 = arith.constant 0 : index
    %3 = vector.load %arg7[%c0, %c0_1] : memref<256x128xf32, #tpu.memory_space<vmem>>, vector<256x128xf32>
    %c0_2 = arith.constant 0 : index
    %c0_3 = arith.constant 0 : index
    %4 = vector.load %arg3[%c0_2, %c0_3] : memref<256x384xbf16, #tpu.memory_space<vmem>>, vector<256x384xbf16>
    %c0_4 = arith.constant 0 : index
    %c0_5 = arith.constant 0 : index
    %5 = vector.load %arg4[%c0_4, %c0_5] : memref<384x128xbf16, #tpu.memory_space<vmem>>, vector<384x128xbf16>
    %cst = arith.constant dense<0.000000e+00> : vector<256x128xf32>
    %6 = tpu.matmul %4, %5, %cst {dimension_numbers = #tpu.dot_dimension_numbers<[1], [0], [0], [1], [0, 0, 1, 1], [], []>} : vector<256x384xbf16>, vector<384x128xbf16>, vector<256x128xf32> -> vector<256x128xf32>
    %7 = arith.addf %3, %6 : vector<256x128xf32>
    %c0_6 = arith.constant 0 : index
    %c0_7 = arith.constant 0 : index
    %8 = vector.load %arg7[%c0_6, %c0_7] : memref<256x128xf32, #tpu.memory_space<vmem>>, vector<256x128xf32>
    tpu.vector_store %arg7[%c0_6, %c0_7], %7 {strides = array<i32>} : memref<256x128xf32, #tpu.memory_space<vmem>>, vector<256x128xf32>,
    %c0_i32_8 = arith.constant 0 : i32
    %9 = arith.cmpi eq, %arg2, %c0_i32_8 : i32
    %10 = arith.extui %9 : i1 to i32
    %c0_i32_9 = arith.constant 0 : i32
    %11 = arith.cmpi ne, %10, %c0_i32_9 : i32
    scf.if %11 {
      %c0_10 = arith.constant 0 : index
      %c0_11 = arith.constant 0 : index
      %12 = vector.load %arg7[%c0_10, %c0_11] : memref<256x128xf32, #tpu.memory_space<vmem>>, vector<256x128xf32>
      %13 = arith.truncf %12 : vector<256x128xf32> to vector<256x128xbf16>
      %c0_12 = arith.constant 0 : index
      %c0_13 = arith.constant 0 : index
      %14 = vector.load %arg5[%c0_12, %c0_13] : memref<256x128xbf16, #tpu.memory_space<vmem>>, vector<256x128xbf16>
      tpu.vector_store %arg5[%c0_12, %c0_13], %13 {strides = array<i32>} : memref<256x128xbf16, #tpu.memory_space<vmem>>, vector<256x128xbf16>,
      %cst_14 = arith.constant dense<0.000000e+00> : vector<128xf32>
      %15 = vector.multi_reduction <add>, %12, %cst_14 [0] : vector<256x128xf32> to vector<128xf32>
      %16 = vector.shape_cast %15 : vector<128xf32> to vector<1x128xf32>
      %17 = arith.mulf %12, %12 : vector<256x128xf32>
      %cst_15 = arith.constant dense<0.000000e+00> : vector<128xf32>
      %18 = vector.multi_reduction <add>, %17, %cst_15 [0] : vector<256x128xf32> to vector<128xf32>
      %19 = vector.shape_cast %18 : vector<128xf32> to vector<1x128xf32>
      %cst_16 = arith.constant 0.000000e+00 : f32
      %20 = vector.broadcast %cst_16 : f32 to vector<6x128xf32>
      %21 = tpu.concatenate %16, %19, %20 in 0 : vector<1x128xf32>, vector<1x128xf32>, vector<6x128xf32> -> vector<8x128xf32>
      %c0_17 = arith.constant 0 : index
      %c0_18 = arith.constant 0 : index
      %22 = vector.load %arg6[%c0_17, %c0_18] : memref<8x128xf32, #tpu.memory_space<vmem>>, vector<8x128xf32>
      tpu.vector_store %arg6[%c0_17, %c0_18], %21 {strides = array<i32>} : memref<8x128xf32, #tpu.memory_space<vmem>>, vector<8x128xf32>,
    } else {
    }
    return
  }
  func.func @transform_0(%arg0: i32, %arg1: i32, %arg2: i32) -> (i32, i32) {
    %c0_i32 = arith.constant 0 : i32
    return %arg0, %arg2 : i32, i32
  }
  func.func @transform_1(%arg0: i32, %arg1: i32, %arg2: i32) -> (i32, i32) {
    %c0_i32 = arith.constant 0 : i32
    return %arg2, %arg1 : i32, i32
  }
  func.func @transform_2(%arg0: i32, %arg1: i32, %arg2: i32) -> (i32, i32) {
    %c0_i32 = arith.constant 0 : i32
    return %arg0, %arg1 : i32, i32
  }
  func.func @transform_3(%arg0: i32, %arg1: i32, %arg2: i32) -> (i32, i32) {
    %c0_i32 = arith.constant 0 : i32
    return %arg0, %arg1 : i32, i32
  }
}

</mosaic_0001>

<llo_original>
// kernel: tpu_custom_call.1
$region0: #{tpu_custom_call.1}
  #allocation0 [shape = 'u32[]', space=smem, size = 0x4, offset = 0x4, fixed_abs, tag = 'smem constant byte address 0x4 - core index']
  #allocation1 [shape = 'u32[144,128]{1,0:T(1,128)}', space=vmem, size = 0x12000, scoped, tag = 'internal scratch']
  #allocation2 [shape = 'f32[256,128]{1,0:T(8,128)}', space=vmem, size = 0x20000, scoped, tag = 'scratch operand']
  %s0 = inlined_call_operand.hbm [shape: bf16[512,384], index: 0, kind: input, shape index: {}]
  %s1 = inlined_call_operand.hbm [shape: bf16[384,128], index: 1, kind: input, shape index: {}]
  %s2 = inlined_call_operand.hbm [shape: bf16[512,128], index: 2, kind: output, shape index: {0}]
  %s3 = inlined_call_operand.hbm [shape: f32[16,128], index: 3, kind: output, shape index: {1}]
  %4 = xla_tuple %s2, %s3
  %s5 = sld [smem:[#allocation0]]
  $region65: #{tpu_custom_call.1} parent=0
    _
  %s7 = ssub.s32 1, %s5
  %s8 = scalar_select 0, %s7, %s5
  $region1: #{tpu_custom_call.1} parent=0
    #allocation3 [shape = 'u8[393216]{0}', space=vmem, size = 0x60000, scoped, tag = 'input window, operand 0']
    #allocation4 [shape = 's32[2]{0}', space=sflag, size = 0x8, scoped, tag = 'scoped memory for tpu_custom_call.1']
    #allocation5 [shape = 's32[2]{0}', space=sflag, size = 0x8, scoped, tag = 'scoped memory for tpu_custom_call.1']
    #allocation6 [shape = 'u8[98304]{0}', space=vmem, size = 0x18000, scoped, tag = 'input window, operand 1, single buffered']
    #allocation7 [shape = 's32[1]{0}', space=sflag, size = 0x4, scoped, tag = 'scoped memory for tpu_custom_call.1']
    #allocation8 [shape = 'u8[131072]{0}', space=vmem, size = 0x20000, scoped, tag = 'output window, operand 0']
    #allocation9 [shape = 'u8[8192]{0}', space=vmem, size = 0x2000, scoped, tag = 'output window, operand 1']
    #allocation10 [shape = 's32[2]{0}', space=sflag, size = 0x8, scoped, tag = 'scoped memory for tpu_custom_call.1']
    %9 = vsyncpa [#allocation4], 0
    %s10 = scalar_lea.sflag [#allocation4], 1
    %11 = vsyncpa %s10, 0
    %12 = vsyncpa [#allocation7], 0
    %13 = vsyncpa [#allocation5], 0
    %s14 = scalar_lea.sflag [#allocation5], 1
    %15 = vsyncpa %s14, 0
    %16 = vsyncpa [#allocation10], 0
    %s17 = scalar_lea.sflag [#allocation10], 1
    %18 = vsyncpa %s17, 0
    loop: start=0, step=1, limit=4
    $region2: #{tpu_custom_call.1} parent=1 // loop_pre_header
      _
    $region3: #{tpu_custom_call.1} parent=1 // loop_header
      %s20 = sphi 0, %s24
      %p21 = scmp.ge.s32.totalorder %s20, 4
      %s27 = sphi 0, %s46
      %s28 = sphi 0, %s42
      %s29 = sphi 0, %s38
      %s30 = sphi 0, %s27
      %s31 = sphi 0, %s28
      %s32 = sphi 0, %s29
      %s33 = sphi 0, %s30
      %s34 = sphi 0, %s31
      %s35 = sphi 0, %s32
      %s51 = sphi 0, %s53
      %s54 = sphi 0, %s51
      %s55 = sphi 0, %s54
      %s71 = sphi 0, %s55
      %s79 = sphi 0, %s81
      %s82 = sphi 0, %s79
      %s83 = sphi 0, %s82
      %s99 = sphi 0, %s83
      %s107 = sphi 0, %s109
      %s110 = sphi 0, %s107
      %s111 = sphi 0, %s110
      %s127 = sphi 0, %s111
      %s135 = sphi 0, %s137
      %s138 = sphi 0, %s135
      %s139 = sphi 0, %s138
      %s155 = sphi 0, %s139
    $region4: #{tpu_custom_call.1} parent=1 // loop_header_branch
      %23 = sbr.rel (%p21) target = $region8
    $region5: #{tpu_custom_call.1} parent=1 // loop_body
      %s25 = ssub.s32 %s20, 1
      %s26 = ssub.s32 %s20, 2
      %s36 = sadd.s32 1, %s29
      %p37 = scmp.ge.s32.totalorder %s36, 1
      %s38 = scalar_select %p37, 0, %s36
      %s39 = sadd.s32 1, %s28
      %s40 = scalar_select %p37, %s39, %s28
      %p41 = scmp.ge.s32.totalorder %s40, 1
      %s42 = scalar_select %p41, 0, %s40
      %s43 = sadd.s32 1, %s27
      %s44 = scalar_select %p41, %s43, %s27
      %p45 = scmp.ge.s32.totalorder %s44, 2
      %s46 = scalar_select %p45, 0, %s44
      %s47 = ssub.s32 %s27, %s46
      %s48 = ssub.s32 %s29, %s38
      %s49 = sor.u32 %s47, %s48
      %p50 = scmp.eq.s32.totalorder %s49, 0
      %s52 = sadd.s32 %s51, 1
      %s53 = scalar_select %p50, %s51, %s52
      %p56 = pneg %p50
      %p57 = scmp.eq.s32.totalorder %s20, 1
      %p58 = por %p56, %p57
      %p59 = scmp.ne.s32.totalorder %s51, %s54
      %p60 = scmp.eq.s32.totalorder %s20, 0
      %p61 = por %p59, %p60
      %p62 = scmp.ne.s32.totalorder %s51, %s54
      %p63 = scmp.eq.s32.totalorder %s25, 1
      %p64 = por %p62, %p63
      %p65 = scmp.ne.s32.totalorder %s54, %s55
      %p66 = scmp.eq.s32.totalorder %s25, 0
      %p67 = por %p65, %p66
      %p68 = scmp.ne.s32.totalorder %s54, %s55
      %p69 = scmp.eq.s32.totalorder %s26, 1
      %p70 = por %p68, %p69
      %p72 = scmp.ne.s32.totalorder %s55, %s71
      %p73 = scmp.eq.s32.totalorder %s26, 0
      %p74 = por %p72, %p73
      %s75 = ssub.s32 %s29, %s38
      %s76 = ssub.s32 %s28, %s42
      %s77 = sor.u32 %s75, %s76
      %p78 = scmp.eq.s32.totalorder %s77, 0
      %s80 = sadd.s32 %s79, 1
      %s81 = scalar_select %p78, %s79, %s80
      %p84 = pneg %p78
      %p85 = scmp.eq.s32.totalorder %s20, 1
      %p86 = por %p84, %p85
      %p87 = scmp.ne.s32.totalorder %s79, %s82
      %p88 = scmp.eq.s32.totalorder %s20, 0
      %p89 = por %p87, %p88
      %p90 = scmp.ne.s32.totalorder %s79, %s82
      %p91 = scmp.eq.s32.totalorder %s25, 1
      %p92 = por %p90, %p91
      %p93 = scmp.ne.s32.totalorder %s82, %s83
      %p94 = scmp.eq.s32.totalorder %s25, 0
      %p95 = por %p93, %p94
      %p96 = scmp.ne.s32.totalorder %s82, %s83
      %p97 = scmp.eq.s32.totalorder %s26, 1
      %p98 = por %p96, %p97
      %p100 = scmp.ne.s32.totalorder %s83, %s99
      %p101 = scmp.eq.s32.totalorder %s26, 0
      %p102 = por %p100, %p101
      %s103 = ssub.s32 %s27, %s46
      %s104 = ssub.s32 %s28, %s42
      %s105 = sor.u32 %s103, %s104
      %p106 = scmp.eq.s32.totalorder %s105, 0
      %s108 = sadd.s32 %s107, 1
      %s109 = scalar_select %p106, %s107, %s108
      %p112 = pneg %p106
      %p113 = scmp.eq.s32.totalorder %s20, 1
      %p114 = por %p112, %p113
      %p115 = scmp.ne.s32.totalorder %s107, %s110
      %p116 = scmp.eq.s32.totalorder %s20, 0
      %p117 = por %p115, %p116
      %p118 = scmp.ne.s32.totalorder %s107, %s110
      %p119 = scmp.eq.s32.totalorder %s25, 1
      %p120 = por %p118, %p119
      %p121 = scmp.ne.s32.totalorder %s110, %s111
      %p122 = scmp.eq.s32.totalorder %s25, 0
      %p123 = por %p121, %p122
      %p124 = scmp.ne.s32.totalorder %s110, %s111
      %p125 = scmp.eq.s32.totalorder %s26, 1
      %p126 = por %p124, %p125
      %p128 = scmp.ne.s32.totalorder %s111, %s127
      %p129 = scmp.eq.s32.totalorder %s26, 0
      %p130 = por %p128, %p129
      %s131 = ssub.s32 %s27, %s46
      %s132 = ssub.s32 %s28, %s42
      %s133 = sor.u32 %s131, %s132
      %p134 = scmp.eq.s32.totalorder %s133, 0
      %s136 = sadd.s32 %s135, 1
      %s137 = scalar_select %p134, %s135, %s136
      %p140 = pneg %p134
      %p141 = scmp.eq.s32.totalorder %s20, 1
      %p142 = por %p140, %p141
      %p143 = scmp.ne.s32.totalorder %s135, %s138
      %p144 = scmp.eq.s32.totalorder %s20, 0
      %p145 = por %p143, %p144
      %p146 = scmp.ne.s32.totalorder %s135, %s138
      %p147 = scmp.eq.s32.totalorder %s25, 1
      %p148 = por %p146, %p147
      %p149 = scmp.ne.s32.totalorder %s138, %s139
      %p150 = scmp.eq.s32.totalorder %s25, 0
      %p151 = por %p149, %p150
      %p152 = scmp.ne.s32.totalorder %s138, %s139
      %p153 = scmp.eq.s32.totalorder %s26, 1
      %p154 = por %p152, %p153
      %p156 = scmp.ne.s32.totalorder %s139, %s155
      %p157 = scmp.eq.s32.totalorder %s26, 0
      %p158 = por %p156, %p157
      %p159 = scmp.le.s32.totalorder 1, %s20
      %p160 = scmp.lt.s32.totalorder %s20, 3
      %p161 = pnand %p159, %p160
      %p162 = pneg %p161
      // Predicated region
      $region9: #{tpu_custom_call.1} parent=5 // pred_check
        _
      $region10: #{tpu_custom_call.1} parent=5 // pred_check_branch
        %164 = sbr.rel (%p161) target = $region12
      $region11: #{tpu_custom_call.1} parent=5 // pred_region
        %s165 = ssub.s32 %s20, 1
        // Predicated region
        $region13: #{tpu_custom_call.1} parent=11 // pred_check
          %p166 = pneg %p95
        $region14: #{tpu_custom_call.1} parent=11 // pred_check_branch
          %168 = sbr.rel (%p166) target = $region16
        $region15: #{tpu_custom_call.1} parent=11 // pred_region
          %s169 = smul.u32 48, %s32
          %s171 = ssub.s32 3072, 3072
          %172 = vsyncadd [#allocation7], %s171
          %s173 = sadd.s32 %s31, %s169
          %s174 = smul.addr %s173, 64
          %s175 = scalar_lea.hbm %s1, %s174
          %s176 = sshll.u32 [#allocation6], 4
          %s177 = int_to_ptr.vmem [resolvable:$true] %s176
          %182 = dma.hbm_to_vmem [thread:$0]  %s175, 3072, %s177, [#allocation7], 64, 64, 4
        $region16: #{tpu_custom_call.1} parent=11 // pred_fallthru
          _
      $region12: #{tpu_custom_call.1} parent=5 // pred_fallthru
        _
      %p183 = scmp.lt.s32.totalorder %s20, 2
      // Predicated region
      $region17: #{tpu_custom_call.1} parent=5 // pred_check
        %p184 = pneg %p183
      $region18: #{tpu_custom_call.1} parent=5 // pred_check_branch
        %186 = sbr.rel (%p184) target = $region20
      $region19: #{tpu_custom_call.1} parent=5 // pred_region
        // Predicated region
        $region21: #{tpu_custom_call.1} parent=19 // pred_check
          %p187 = pneg %p61
        $region22: #{tpu_custom_call.1} parent=19 // pred_check_branch
          %189 = sbr.rel (%p187) target = $region24
        $region23: #{tpu_custom_call.1} parent=19 // pred_region
          %s190 = sand.u32 %s51, 1
          %s191 = scalar_lea.sflag [#allocation4], %s190
          %s192 = sand.u32 %s51, 1
          %s193 = smul.addr %s192, 384
          %s194 = scalar_lea.vmem [#allocation3], %s193
          %s195 = smul.u32 32, %s27
          %s196 = smul.u32 3, %s29
          %s198 = ssub.s32 6144, 6144
          %199 = vsyncadd %s191, %s198
          %s200 = smul.addr %s195, 3
          %s201 = sadd.s32 %s196, %s200
          %s202 = smul.addr %s201, 64
          %s203 = scalar_lea.hbm %s0, %s202
          %s204 = sshll.u32 %s194, 4
          %s205 = int_to_ptr.vmem [resolvable:$true] %s204
          %210 = dma.hbm_to_vmem [thread:$0]  %s203, 6144, %s205, %s191, 192, 192, 12
        $region24: #{tpu_custom_call.1} parent=19 // pred_fallthru
          _
      $region20: #{tpu_custom_call.1} parent=5 // pred_fallthru
        _
      %p211 = scmp.le.s32.totalorder 1, %s20
      %p212 = scmp.lt.s32.totalorder %s20, 3
      %p213 = pnand %p211, %p212
      %p214 = pneg %p213
      // Predicated region
      $region25: #{tpu_custom_call.1} parent=5 // pred_check
        _
      $region26: #{tpu_custom_call.1} parent=5 // pred_check_branch
        %216 = sbr.rel (%p213) target = $region28
      $region27: #{tpu_custom_call.1} parent=5 // pred_region
        %s217 = ssub.s32 %s20, 1
        %s218 = sand.u32 %s54, 1
        %s219 = scalar_lea.sflag [#allocation4], %s218
        %s220 = sand.u32 %s54, 1
        %s221 = smul.addr %s220, 384
        %s222 = scalar_lea.vmem [#allocation3], %s221
        // Predicated region
        $region29: #{tpu_custom_call.1} parent=27 // pred_check
          %p223 = pneg %p67
        $region30: #{tpu_custom_call.1} parent=27 // pred_check_branch
          %225 = sbr.rel (%p223) target = $region32
        $region31: #{tpu_custom_call.1} parent=27 // pred_region
          %226 = dma.done %s219, 6144
        $region32: #{tpu_custom_call.1} parent=27 // pred_fallthru
          _
        // Predicated region
        $region33: #{tpu_custom_call.1} parent=27 // pred_check
          %p227 = pneg %p95
        $region34: #{tpu_custom_call.1} parent=27 // pred_check_branch
          %229 = sbr.rel (%p227) target = $region36
        $region35: #{tpu_custom_call.1} parent=27 // pred_region
          %230 = dma.done [#allocation7], 3072
        $region36: #{tpu_custom_call.1} parent=27 // pred_fallthru
          _
        %s231 = sand.u32 %s54, 1
        %s232 = scalar_lea.sflag [#allocation4], %s231
        %s233 = sand.u32 %s54, 1
        %s234 = smul.addr %s233, 384
        %s235 = scalar_lea.vmem [#allocation3], %s234
        %p236 = pneg %p67
        %p237 = pneg %p64
        %p238 = pneg %p95
        %p239 = pneg %p92
        %p240 = pneg %p123
        %p241 = pneg %p120
        %s242 = sand.u32 %s110, 1
        %s243 = scalar_lea.sflag [#allocation5], %s242
        %s244 = sand.u32 %s110, 1
        %s245 = smul.addr %s244, 128
        %s246 = scalar_lea.vmem [#allocation8], %s245
        %p247 = pneg %p151
        %p248 = pneg %p148
        %s249 = sand.u32 %s138, 1
        %s250 = scalar_lea.sflag [#allocation10], %s249
        %s251 = sand.u32 %s138, 1
        %s252 = smul.addr %s251, 8
        %s253 = scalar_lea.vmem [#allocation9], %s252
        %s254 = smul.u32 32, %s30
        %s255 = smul.u32 3, %s32
        %s256 = smul.u32 48, %s32
        %s257 = smul.u32 32, %s30
        %p259 = scmp.eq.s32.totalorder %s32, 0
        // Predicated region
        $region37: #{tpu_custom_call.1} parent=27 // pred_check
          %p260 = pneg %p259
        $region38: #{tpu_custom_call.1} parent=27 // pred_check_branch
          %262 = sbr.rel (%p260) target = $region40
        $region39: #{tpu_custom_call.1} parent=27 // pred_region
          %263 = vst [vmem:[#allocation2] sm:$0xff] 0.0
          %264 = vst [vmem:[#allocation2 + $0x8] sm:$0xff] 0.0
          %265 = vst [vmem:[#allocation2 + $0x10] sm:$0xff] 0.0
          %266 = vst [vmem:[#allocation2 + $0x18] sm:$0xff] 0.0
          %267 = vst [vmem:[#allocation2 + $0x20] sm:$0xff] 0.0
          %268 = vst [vmem:[#allocation2 + $0x28] sm:$0xff] 0.0
          %269 = vst [vmem:[#allocation2 + $0x30] sm:$0xff] 0.0
          %270 = vst [vmem:[#allocation2 + $0x38] sm:$0xff] 0.0
          %271 = vst [vmem:[#allocation2 + $0x40] sm:$0xff] 0.0
          %272 = vst [vmem:[#allocation2 + $0x48] sm:$0xff] 0.0
          %273 = vst [vmem:[#allocation2 + $0x50] sm:$0xff] 0.0
          %274 = vst [vmem:[#allocation2 + $0x58] sm:$0xff] 0.0
          %275 = vst [vmem:[#allocation2 + $0x60] sm:$0xff] 0.0
          %276 = vst [vmem:[#allocation2 + $0x68] sm:$0xff] 0.0
          %277 = vst [vmem:[#allocation2 + $0x70] sm:$0xff] 0.0
          %278 = vst [vmem:[#allocation2 + $0x78] sm:$0xff] 0.0
          %279 = vst [vmem:[#allocation2 + $0x80] sm:$0xff] 0.0
          %280 = vst [vmem:[#allocation2 + $0x88] sm:$0xff] 0.0
          %281 = vst [vmem:[#allocation2 + $0x90] sm:$0xff] 0.0
          %282 = vst [vmem:[#allocation2 + $0x98] sm:$0xff] 0.0
          %283 = vst [vmem:[#allocation2 + $0xa0] sm:$0xff] 0.0
          %284 = vst [vmem:[#allocation2 + $0xa8] sm:$0xff] 0.0
          %285 = vst [vmem:[#allocation2 + $0xb0] sm:$0xff] 0.0
          %286 = vst [vmem:[#allocation2 + $0xb8] sm:$0xff] 0.0
          %287 = vst [vmem:[#allocation2 + $0xc0] sm:$0xff] 0.0
          %288 = vst [vmem:[#allocation2 + $0xc8] sm:$0xff] 0.0
          %289 = vst [vmem:[#allocation2 + $0xd0] sm:$0xff] 0.0
          %290 = vst [vmem:[#allocation2 + $0xd8] sm:$0xff] 0.0
          %291 = vst [vmem:[#allocation2 + $0xe0] sm:$0xff] 0.0
          %292 = vst [vmem:[#allocation2 + $0xe8] sm:$0xff] 0.0
          %293 = vst [vmem:[#allocation2 + $0xf0] sm:$0xff] 0.0
          %294 = vst [vmem:[#allocation2 + $0xf8] sm:$0xff] 0.0
        $region40: #{tpu_custom_call.1} parent=27 // pred_fallthru
          _
        %v295 = vld [vmem:[#allocation2] sm:$0xff]
        %v296 = vld [vmem:[#allocation2 + $0x8] sm:$0xff]
        %v297 = vld [vmem:[#allocation2 + $0x10] sm:$0xff]
        %v298 = vld [vmem:[#allocation2 + $0x18] sm:$0xff]
        %v299 = vld [vmem:[#allocation2 + $0x20] sm:$0xff]
        %v300 = vld [vmem:[#allocation2 + $0x28] sm:$0xff]
        %v301 = vld [vmem:[#allocation2 + $0x30] sm:$0xff]
        %v302 = vld [vmem:[#allocation2 + $0x38] sm:$0xff]
        %v303 = vld [vmem:[#allocation2 + $0x40] sm:$0xff]
        %v304 = vld [vmem:[#allocation2 + $0x48] sm:$0xff]
        %v305 = vld [vmem:[#allocation2 + $0x50] sm:$0xff]
        %v306 = vld [vmem:[#allocation2 + $0x58] sm:$0xff]
        %v307 = vld [vmem:[#allocation2 + $0x60] sm:$0xff]
        %v308 = vld [vmem:[#allocation2 + $0x68] sm:$0xff]
        %v309 = vld [vmem:[#allocation2 + $0x70] sm:$0xff]
        %v310 = vld [vmem:[#allocation2 + $0x78] sm:$0xff]
        %v311 = vld [vmem:[#allocation2 + $0x80] sm:$0xff]
        %v312 = vld [vmem:[#allocation2 + $0x88] sm:$0xff]
        %v313 = vld [vmem:[#allocation2 + $0x90] sm:$0xff]
        %v314 = vld [vmem:[#allocation2 + $0x98] sm:$0xff]
        %v315 = vld [vmem:[#allocation2 + $0xa0] sm:$0xff]
        %v316 = vld [vmem:[#allocation2 + $0xa8] sm:$0xff]
        %v317 = vld [vmem:[#allocation2 + $0xb0] sm:$0xff]
        %v318 = vld [vmem:[#allocation2 + $0xb8] sm:$0xff]
        %v319 = vld [vmem:[#allocation2 + $0xc0] sm:$0xff]
        %v320 = vld [vmem:[#allocation2 + $0xc8] sm:$0xff]
        %v321 = vld [vmem:[#allocation2 + $0xd0] sm:$0xff]
        %v322 = vld [vmem:[#allocation2 + $0xd8] sm:$0xff]
        %v323 = vld [vmem:[#allocation2 + $0xe0] sm:$0xff]
        %v324 = vld [vmem:[#allocation2 + $0xe8] sm:$0xff]
        %v325 = vld [vmem:[#allocation2 + $0xf0] sm:$0xff]
        %v326 = vld [vmem:[#allocation2 + $0xf8] sm:$0xff]
        %v327 = vld [vmem:[%s222] sm:$0xff]
        %v328 = vld [vmem:[%s222 + $0x8] sm:$0xf]
        %v329 = vld [vmem:[%s222 + $0xc] sm:$0xff]
        %v330 = vld [vmem:[%s222 + $0x14] sm:$0xf]
        %v331 = vld [vmem:[%s222 + $0x18] sm:$0xff]
        %v332 = vld [vmem:[%s222 + $0x20] sm:$0xf]
        %v333 = vld [vmem:[%s222 + $0x24] sm:$0xff]
        %v334 = vld [vmem:[%s222 + $0x2c] sm:$0xf]
        %v335 = vld [vmem:[%s222 + $0x30] sm:$0xff]
        %v336 = vld [vmem:[%s222 + $0x38] sm:$0xf]
        %v337 = vld [vmem:[%s222 + $0x3c] sm:$0xff]
        %v338 = vld [vmem:[%s222 + $0x44] sm:$0xf]
        %v339 = vld [vmem:[%s222 + $0x48] sm:$0xff]
        %v340 = vld [vmem:[%s222 + $0x50] sm:$0xf]
        %v341 = vld [vmem:[%s222 + $0x54] sm:$0xff]
        %v342 = vld [vmem:[%s222 + $0x5c] sm:$0xf]
        %v343 = vld [vmem:[%s222 + $0x60] sm:$0xff]
        %v344 = vld [vmem:[%s222 + $0x68] sm:$0xf]
        %v345 = vld [vmem:[%s222 + $0x6c] sm:$0xff]
        %v346 = vld [vmem:[%s222 + $0x74] sm:$0xf]
        %v347 = vld [vmem:[%s222 + $0x78] sm:$0xff]
        %v348 = vld [vmem:[%s222 + $0x80] sm:$0xf]
        %v349 = vld [vmem:[%s222 + $0x84] sm:$0xff]
        %v350 = vld [vmem:[%s222 + $0x8c] sm:$0xf]
        %v351 = vld [vmem:[%s222 + $0x90] sm:$0xff]
        %v352 = vld [vmem:[%s222 + $0x98] sm:$0xf]
        %v353 = vld [vmem:[%s222 + $0x9c] sm:$0xff]
        %v354 = vld [vmem:[%s222 + $0xa4] sm:$0xf]
        %v355 = vld [vmem:[%s222 + $0xa8] sm:$0xff]
        %v356 = vld [vmem:[%s222 + $0xb0] sm:$0xf]
        %v357 = vld [vmem:[%s222 + $0xb4] sm:$0xff]
        %v358 = vld [vmem:[%s222 + $0xbc] sm:$0xf]
        %v359 = vld [vmem:[%s222 + $0xc0] sm:$0xff]
        %v360 = vld [vmem:[%s222 + $0xc8] sm:$0xf]
        %v361 = vld [vmem:[%s222 + $0xcc] sm:$0xff]
        %v362 = vld [vmem:[%s222 + $0xd4] sm:$0xf]
        %v363 = vld [vmem:[%s222 + $0xd8] sm:$0xff]
        %v364 = vld [vmem:[%s222 + $0xe0] sm:$0xf]
        %v365 = vld [vmem:[%s222 + $0xe4] sm:$0xff]
        %v366 = vld [vmem:[%s222 + $0xec] sm:$0xf]
        %v367 = vld [vmem:[%s222 + $0xf0] sm:$0xff]
        %v368 = vld [vmem:[%s222 + $0xf8] sm:$0xf]
        %v369 = vld [vmem:[%s222 + $0xfc] sm:$0xff]
        %v370 = vld [vmem:[%s222 + $0x104] sm:$0xf]
        %v371 = vld [vmem:[%s222 + $0x108] sm:$0xff]
        %v372 = vld [vmem:[%s222 + $0x110] sm:$0xf]
        %v373 = vld [vmem:[%s222 + $0x114] sm:$0xff]
        %v374 = vld [vmem:[%s222 + $0x11c] sm:$0xf]
        %v375 = vld [vmem:[%s222 + $0x120] sm:$0xff]
        %v376 = vld [vmem:[%s222 + $0x128] sm:$0xf]
        %v377 = vld [vmem:[%s222 + $0x12c] sm:$0xff]
        %v378 = vld [vmem:[%s222 + $0x134] sm:$0xf]
        %v379 = vld [vmem:[%s222 + $0x138] sm:$0xff]
        %v380 = vld [vmem:[%s222 + $0x140] sm:$0xf]
        %v381 = vld [vmem:[%s222 + $0x144] sm:$0xff]
        %v382 = vld [vmem:[%s222 + $0x14c] sm:$0xf]
        %v383 = vld [vmem:[%s222 + $0x150] sm:$0xff]
        %v384 = vld [vmem:[%s222 + $0x158] sm:$0xf]
        %v385 = vld [vmem:[%s222 + $0x15c] sm:$0xff]
        %v386 = vld [vmem:[%s222 + $0x164] sm:$0xf]
        %v387 = vld [vmem:[%s222 + $0x168] sm:$0xff]
        %v388 = vld [vmem:[%s222 + $0x170] sm:$0xf]
        %v389 = vld [vmem:[%s222 + $0x174] sm:$0xff]
        %v390 = vld [vmem:[%s222 + $0x17c] sm:$0xf]
        %v391 = vld [vmem:[#allocation6] sm:$0xf]
        %v392 = vld [vmem:[#allocation6 + $0x4] sm:$0xf]
        %v393 = vld [vmem:[#allocation6 + $0x8] sm:$0xf]
        %v394 = vld [vmem:[#allocation6 + $0xc] sm:$0xf]
        %v395 = vld [vmem:[#allocation6 + $0x10] sm:$0xf]
        %v396 = vld [vmem:[#allocation6 + $0x14] sm:$0xf]
        %v397 = vld [vmem:[#allocation6 + $0x18] sm:$0xf]
        %v398 = vld [vmem:[#allocation6 + $0x1c] sm:$0xf]
        %v399 = vld [vmem:[#allocation6 + $0x20] sm:$0xf]
        %v400 = vld [vmem:[#allocation6 + $0x24] sm:$0xf]
        %v401 = vld [vmem:[#allocation6 + $0x28] sm:$0xf]
        %v402 = vld [vmem:[#allocation6 + $0x2c] sm:$0xf]
        %v403 = vld [vmem:[#allocation6 + $0x30] sm:$0xf]
        %v404 = vld [vmem:[#allocation6 + $0x34] sm:$0xf]
        %v405 = vld [vmem:[#allocation6 + $0x38] sm:$0xf]
        %v406 = vld [vmem:[#allocation6 + $0x3c] sm:$0xf]
        %v407 = vld [vmem:[#allocation6 + $0x40] sm:$0xf]
        %v408 = vld [vmem:[#allocation6 + $0x44] sm:$0xf]
        %v409 = vld [vmem:[#allocation6 + $0x48] sm:$0xf]
        %v410 = vld [vmem:[#allocation6 + $0x4c] sm:$0xf]
        %v411 = vld [vmem:[#allocation6 + $0x50] sm:$0xf]
        %v412 = vld [vmem:[#allocation6 + $0x54] sm:$0xf]
        %v413 = vld [vmem:[#allocation6 + $0x58] sm:$0xf]
        %v414 = vld [vmem:[#allocation6 + $0x5c] sm:$0xf]
        %v415 = vld [vmem:[#allocation6 + $0x60] sm:$0xf]
        %v416 = vld [vmem:[#allocation6 + $0x64] sm:$0xf]
        %v417 = vld [vmem:[#allocation6 + $0x68] sm:$0xf]
        %v418 = vld [vmem:[#allocation6 + $0x6c] sm:$0xf]
        %v419 = vld [vmem:[#allocation6 + $0x70] sm:$0xf]
        %v420 = vld [vmem:[#allocation6 + $0x74] sm:$0xf]
        %v421 = vld [vmem:[#allocation6 + $0x78] sm:$0xf]
        %v422 = vld [vmem:[#allocation6 + $0x7c] sm:$0xf]
        %v423 = vld [vmem:[#allocation6 + $0x80] sm:$0xf]
        %v424 = vld [vmem:[#allocation6 + $0x84] sm:$0xf]
        %v425 = vld [vmem:[#allocation6 + $0x88] sm:$0xf]
        %v426 = vld [vmem:[#allocation6 + $0x8c] sm:$0xf]
        %v427 = vld [vmem:[#allocation6 + $0x90] sm:$0xf]
        %v428 = vld [vmem:[#allocation6 + $0x94] sm:$0xf]
        %v429 = vld [vmem:[#allocation6 + $0x98] sm:$0xf]
        %v430 = vld [vmem:[#allocation6 + $0x9c] sm:$0xf]
        %v431 = vld [vmem:[#allocation6 + $0xa0] sm:$0xf]
        %v432 = vld [vmem:[#allocation6 + $0xa4] sm:$0xf]
        %v433 = vld [vmem:[#allocation6 + $0xa8] sm:$0xf]
        %v434 = vld [vmem:[#allocation6 + $0xac] sm:$0xf]
        %v435 = vld [vmem:[#allocation6 + $0xb0] sm:$0xf]
        %v436 = vld [vmem:[#allocation6 + $0xb4] sm:$0xf]
        %v437 = vld [vmem:[#allocation6 + $0xb8] sm:$0xf]
        %v438 = vld [vmem:[#allocation6 + $0xbc] sm:$0xf]
        %v503 = vunpack.c.l.b16 %v327
        %v504 = vunpack.c.h.b16 %v327
        %v505 = vunpack.c.l.b16 %v328
        %v506 = vunpack.c.l.b16 %v329
        %v507 = vunpack.c.h.b16 %v329
        %v508 = vunpack.c.l.b16 %v330
        %v509 = vunpack.c.l.b16 %v331
        %v510 = vunpack.c.h.b16 %v331
        %v511 = vunpack.c.l.b16 %v332
        %v512 = vunpack.c.l.b16 %v333
        %v513 = vunpack.c.h.b16 %v333
        %v514 = vunpack.c.l.b16 %v334
        %v515 = vunpack.c.l.b16 %v335
        %v516 = vunpack.c.h.b16 %v335
        %v517 = vunpack.c.l.b16 %v336
        %v518 = vunpack.c.l.b16 %v337
        %v519 = vunpack.c.h.b16 %v337
        %v520 = vunpack.c.l.b16 %v338
        %v521 = vunpack.c.l.b16 %v339
        %v522 = vunpack.c.h.b16 %v339
        %v523 = vunpack.c.l.b16 %v340
        %v524 = vunpack.c.l.b16 %v341
        %v525 = vunpack.c.h.b16 %v341
        %v526 = vunpack.c.l.b16 %v342
        %v527 = vunpack.c.l.b16 %v343
        %v528 = vunpack.c.h.b16 %v343
        %v529 = vunpack.c.l.b16 %v344
        %v530 = vunpack.c.l.b16 %v345
        %v531 = vunpack.c.h.b16 %v345
        %v532 = vunpack.c.l.b16 %v346
        %v533 = vunpack.c.l.b16 %v347
        %v534 = vunpack.c.h.b16 %v347
        %v535 = vunpack.c.l.b16 %v348
        %v536 = vunpack.c.l.b16 %v349
        %v537 = vunpack.c.h.b16 %v349
        %v538 = vunpack.c.l.b16 %v350
        %v539 = vunpack.c.l.b16 %v351
        %v540 = vunpack.c.h.b16 %v351
        %v541 = vunpack.c.l.b16 %v352
        %v542 = vunpack.c.l.b16 %v353
        %v543 = vunpack.c.h.b16 %v353
        %v544 = vunpack.c.l.b16 %v354
        %v545 = vunpack.c.l.b16 %v355
        %v546 = vunpack.c.h.b16 %v355
        %v547 = vunpack.c.l.b16 %v356
        %v548 = vunpack.c.l.b16 %v357
        %v549 = vunpack.c.h.b16 %v357
        %v550 = vunpack.c.l.b16 %v358
        %v551 = vunpack.c.l.b16 %v359
        %v552 = vunpack.c.h.b16 %v359
        %v553 = vunpack.c.l.b16 %v360
        %v554 = vunpack.c.l.b16 %v361
        %v555 = vunpack.c.h.b16 %v361
        %v556 = vunpack.c.l.b16 %v362
        %v557 = vunpack.c.l.b16 %v363
        %v558 = vunpack.c.h.b16 %v363
        %v559 = vunpack.c.l.b16 %v364
        %v560 = vunpack.c.l.b16 %v365
        %v561 = vunpack.c.h.b16 %v365
        %v562 = vunpack.c.l.b16 %v366
        %v563 = vunpack.c.l.b16 %v367
        %v564 = vunpack.c.h.b16 %v367
        %v565 = vunpack.c.l.b16 %v368
        %v566 = vunpack.c.l.b16 %v369
        %v567 = vunpack.c.h.b16 %v369
        %v568 = vunpack.c.l.b16 %v370
        %v569 = vunpack.c.l.b16 %v371
        %v570 = vunpack.c.h.b16 %v371
        %v571 = vunpack.c.l.b16 %v372
        %v572 = vunpack.c.l.b16 %v373
        %v573 = vunpack.c.h.b16 %v373
        %v574 = vunpack.c.l.b16 %v374
        %v575 = vunpack.c.l.b16 %v375
        %v576 = vunpack.c.h.b16 %v375
        %v577 = vunpack.c.l.b16 %v376
        %v578 = vunpack.c.l.b16 %v377
        %v579 = vunpack.c.h.b16 %v377
        %v580 = vunpack.c.l.b16 %v378
        %v581 = vunpack.c.l.b16 %v379
        %v582 = vunpack.c.h.b16 %v379
        %v583 = vunpack.c.l.b16 %v380
        %v584 = vunpack.c.l.b16 %v381
        %v585 = vunpack.c.h.b16 %v381
        %v586 = vunpack.c.l.b16 %v382
        %v587 = vunpack.c.l.b16 %v383
        %v588 = vunpack.c.h.b16 %v383
        %v589 = vunpack.c.l.b16 %v384
        %v590 = vunpack.c.l.b16 %v385
        %v591 = vunpack.c.h.b16 %v385
        %v592 = vunpack.c.l.b16 %v386
        %v593 = vunpack.c.l.b16 %v387
        %v594 = vunpack.c.h.b16 %v387
        %v595 = vunpack.c.l.b16 %v388
        %v596 = vunpack.c.l.b16 %v389
        %v597 = vunpack.c.h.b16 %v389
        %v598 = vunpack.c.l.b16 %v390
        %v599 = vpack.c.b16 %v506, %v503
        %v600 = vpack.c.b16 %v507, %v504
        %v601 = vpack.c.b16 %v508, %v505
        %v602 = vpack.c.b16 %v512, %v509
        %v603 = vpack.c.b16 %v513, %v510
        %v604 = vpack.c.b16 %v514, %v511
        %v605 = vpack.c.b16 %v518, %v515
        %v606 = vpack.c.b16 %v519, %v516
        %v607 = vpack.c.b16 %v520, %v517
        %v608 = vpack.c.b16 %v524, %v521
        %v609 = vpack.c.b16 %v525, %v522
        %v610 = vpack.c.b16 %v526, %v523
        %v611 = vpack.c.b16 %v530, %v527
        %v612 = vpack.c.b16 %v531, %v528
        %v613 = vpack.c.b16 %v532, %v529
        %v614 = vpack.c.b16 %v536, %v533
        %v615 = vpack.c.b16 %v537, %v534
        %v616 = vpack.c.b16 %v538, %v535
        %v617 = vpack.c.b16 %v542, %v539
        %v618 = vpack.c.b16 %v543, %v540
        %v619 = vpack.c.b16 %v544, %v541
        %v620 = vpack.c.b16 %v548, %v545
        %v621 = vpack.c.b16 %v549, %v546
        %v622 = vpack.c.b16 %v550, %v547
        %v623 = vpack.c.b16 %v554, %v551
        %v624 = vpack.c.b16 %v555, %v552
        %v625 = vpack.c.b16 %v556, %v553
        %v626 = vpack.c.b16 %v560, %v557
        %v627 = vpack.c.b16 %v561, %v558
        %v628 = vpack.c.b16 %v562, %v559
        %v629 = vpack.c.b16 %v566, %v563
        %v630 = vpack.c.b16 %v567, %v564
        %v631 = vpack.c.b16 %v568, %v565
        %v632 = vpack.c.b16 %v572, %v569
        %v633 = vpack.c.b16 %v573, %v570
        %v634 = vpack.c.b16 %v574, %v571
        %v635 = vpack.c.b16 %v578, %v575
        %v636 = vpack.c.b16 %v579, %v576
        %v637 = vpack.c.b16 %v580, %v577
        %v638 = vpack.c.b16 %v584, %v581
        %v639 = vpack.c.b16 %v585, %v582
        %v640 = vpack.c.b16 %v586, %v583
        %v641 = vpack.c.b16 %v590, %v587
        %v642 = vpack.c.b16 %v591, %v588
        %v643 = vpack.c.b16 %v592, %v589
        %v644 = vpack.c.b16 %v596, %v593
        %v645 = vpack.c.b16 %v597, %v594
        %v646 = vpack.c.b16 %v598, %v595
        %v743 = vunpack.c.l.b16 %v391
        %v744 = vunpack.c.l.b16 %v392
        %v745 = vunpack.c.l.b16 %v393
        %v746 = vunpack.c.l.b16 %v394
        %v747 = vunpack.c.l.b16 %v395
        %v748 = vunpack.c.l.b16 %v396
        %v749 = vunpack.c.l.b16 %v397
        %v750 = vunpack.c.l.b16 %v398
        %v751 = vunpack.c.l.b16 %v399
        %v752 = vunpack.c.l.b16 %v400
        %v753 = vunpack.c.l.b16 %v401
        %v754 = vunpack.c.l.b16 %v402
        %v755 = vunpack.c.l.b16 %v403
        %v756 = vunpack.c.l.b16 %v404
        %v757 = vunpack.c.l.b16 %v405
        %v758 = vunpack.c.l.b16 %v406
        %v759 = vunpack.c.l.b16 %v407
        %v760 = vunpack.c.l.b16 %v408
        %v761 = vunpack.c.l.b16 %v409
        %v762 = vunpack.c.l.b16 %v410
        %v763 = vunpack.c.l.b16 %v411
        %v764 = vunpack.c.l.b16 %v412
        %v765 = vunpack.c.l.b16 %v413
        %v766 = vunpack.c.l.b16 %v414
        %v767 = vunpack.c.l.b16 %v415
        %v768 = vunpack.c.l.b16 %v416
        %v769 = vunpack.c.l.b16 %v417
        %v770 = vunpack.c.l.b16 %v418
        %v771 = vunpack.c.l.b16 %v419
        %v772 = vunpack.c.l.b16 %v420
        %v773 = vunpack.c.l.b16 %v421
        %v774 = vunpack.c.l.b16 %v422
        %v775 = vunpack.c.l.b16 %v423
        %v776 = vunpack.c.l.b16 %v424
        %v777 = vunpack.c.l.b16 %v425
        %v778 = vunpack.c.l.b16 %v426
        %v779 = vunpack.c.l.b16 %v427
        %v780 = vunpack.c.l.b16 %v428
        %v781 = vunpack.c.l.b16 %v429
        %v782 = vunpack.c.l.b16 %v430
        %v783 = vunpack.c.l.b16 %v431
        %v784 = vunpack.c.l.b16 %v432
        %v785 = vunpack.c.l.b16 %v433
        %v786 = vunpack.c.l.b16 %v434
        %v787 = vunpack.c.l.b16 %v435
        %v788 = vunpack.c.l.b16 %v436
        %v789 = vunpack.c.l.b16 %v437
        %v790 = vunpack.c.l.b16 %v438
        %v791 = vpack.c.b16 %v744, %v743
        %v792 = vpack.c.b16 %v746, %v745
        %v793 = vpack.c.b16 %v748, %v747
        %v794 = vpack.c.b16 %v750, %v749
        %v795 = vpack.c.b16 %v752, %v751
        %v796 = vpack.c.b16 %v754, %v753
        %v797 = vpack.c.b16 %v756, %v755
        %v798 = vpack.c.b16 %v758, %v757
        %v799 = vpack.c.b16 %v760, %v759
        %v800 = vpack.c.b16 %v762, %v761
        %v801 = vpack.c.b16 %v764, %v763
        %v802 = vpack.c.b16 %v766, %v765
        %v803 = vpack.c.b16 %v768, %v767
        %v804 = vpack.c.b16 %v770, %v769
        %v805 = vpack.c.b16 %v772, %v771
        %v806 = vpack.c.b16 %v774, %v773
        %v807 = vpack.c.b16 %v776, %v775
        %v808 = vpack.c.b16 %v778, %v777
        %v809 = vpack.c.b16 %v780, %v779
        %v810 = vpack.c.b16 %v782, %v781
        %v811 = vpack.c.b16 %v784, %v783
        %v812 = vpack.c.b16 %v786, %v785
        %v813 = vpack.c.b16 %v788, %v787
        %v814 = vpack.c.b16 %v790, %v789
        %839 = vmatprep.subr.bf16.mxu0 0
        %840 = vmatpush1.bf16.msra.mxu0 %v791
        %841 = vmatprep.subr.bf16.mxu0 0
        %842 = vmatpush1.bf16.msra.mxu0 %v792
        %843 = vmatprep.subr.bf16.mxu0 0
        %844 = vmatpush1.bf16.msra.mxu0 %v793
        %845 = vmatprep.subr.bf16.mxu0 0
        %846 = vmatpush1.bf16.msra.mxu0 %v794
        %847 = vmatprep.subr.bf16.mxu0 0
        %848 = vmatpush1.bf16.msra.mxu0 %v795
        %849 = vmatprep.subr.bf16.mxu0 0
        %850 = vmatpush1.bf16.msra.mxu0 %v796
        %851 = vmatprep.subr.bf16.mxu0 0
        %852 = vmatpush1.bf16.msra.mxu0 %v797
        %853 = vmatprep.subr.bf16.mxu0 0
        %854 = vmatpush1.bf16.msra.mxu0 %v798
        %855 = vmatprep.subr.bf16.mxu0 0
        %856 = vmatpush1.bf16.msra.mxu0 %v799
        %857 = vmatprep.subr.bf16.mxu0 0
        %858 = vmatpush1.bf16.msra.mxu0 %v800
        %859 = vmatprep.subr.bf16.mxu0 0
        %860 = vmatpush1.bf16.msra.mxu0 %v801
        %861 = vmatprep.subr.bf16.mxu0 0
        %862 = vmatpush1.bf16.msra.mxu0 %v802
        %863 = vmatprep.subr.bf16.mxu0 0
        %864 = vmatpush1.bf16.msra.mxu0 %v803
        %865 = vmatprep.subr.bf16.mxu0 0
        %866 = vmatpush1.bf16.msra.mxu0 %v804
        %867 = vmatprep.subr.bf16.mxu0 0
        %868 = vmatpush1.bf16.msra.mxu0 %v805
        %869 = vmatprep.subr.bf16.mxu0 0
        %870 = vmatpush1.bf16.msra.mxu0 %v806
        %871 = vmatprep.mubr.bf16.mxu0 %v600
        %872 = vmatmul.mubr.bf16.gmra.mrb[0].mxu0 %v599
        %v873 = vpop.f32.mrb[0].mxu0
        %v874 = vadd.f32 0.0, %v873
        %v875 = vpop.f32.mrb[0].mxu0
        %v876 = vpop.f32.mrb[0].mxu0
        %v877 = vadd.f32 0.0, %v876
        %v878 = vpop.f32.mrb[0].mxu0
        %879 = vmatprep.mubr.bf16.mxu0 %v603
        %880 = vmatmul.mubr.bf16.gmra.mrb[0].mxu0 %v602
        %v881 = vpop.f32.mrb[0].mxu0
        %v882 = vadd.f32 0.0, %v881
        %v883 = vpop.f32.mrb[0].mxu0
        %v884 = vpop.f32.mrb[0].mxu0
        %v885 = vadd.f32 0.0, %v884
        %v886 = vpop.f32.mrb[0].mxu0
        %887 = vmatprep.mubr.bf16.mxu0 %v606
        %888 = vmatmul.mubr.bf16.gmra.mrb[0].mxu0 %v605
        %v889 = vpop.f32.mrb[0].mxu0
        %v890 = vadd.f32 0.0, %v889
        %v891 = vpop.f32.mrb[0].mxu0
        %v892 = vpop.f32.mrb[0].mxu0
        %v893 = vadd.f32 0.0, %v892
        %v894 = vpop.f32.mrb[0].mxu0
        %895 = vmatprep.mubr.bf16.mxu0 %v609
        %896 = vmatmul.mubr.bf16.gmra.mrb[0].mxu0 %v608
        %v897 = vpop.f32.mrb[0].mxu0
        %v898 = vadd.f32 0.0, %v897
        %v899 = vpop.f32.mrb[0].mxu0
        %v900 = vpop.f32.mrb[0].mxu0
        %v901 = vadd.f32 0.0, %v900
        %v902 = vpop.f32.mrb[0].mxu0
        %903 = vmatprep.mubr.bf16.mxu0 %v612
        %904 = vmatmul.mubr.bf16.gmra.mrb[0].mxu0 %v611
        %v905 = vpop.f32.mrb[0].mxu0
        %v906 = vadd.f32 0.0, %v905
        %v907 = vpop.f32.mrb[0].mxu0
        %v908 = vpop.f32.mrb[0].mxu0
        %v909 = vadd.f32 0.0, %v908
        %v910 = vpop.f32.mrb[0].mxu0
        %911 = vmatprep.mubr.bf16.mxu0 %v615
        %912 = vmatmul.mubr.bf16.gmra.mrb[0].mxu0 %v614
        %v913 = vpop.f32.mrb[0].mxu0
        %v914 = vadd.f32 0.0, %v913
        %v915 = vpop.f32.mrb[0].mxu0
        %v916 = vpop.f32.mrb[0].mxu0
        %v917 = vadd.f32 0.0, %v916
        %v918 = vpop.f32.mrb[0].mxu0
        %919 = vmatprep.mubr.bf16.mxu0 %v618
        %920 = vmatmul.mubr.bf16.gmra.mrb[0].mxu0 %v617
        %v921 = vpop.f32.mrb[0].mxu0
        %v922 = vadd.f32 0.0, %v921
        %v923 = vpop.f32.mrb[0].mxu0
        %v924 = vpop.f32.mrb[0].mxu0
        %v925 = vadd.f32 0.0, %v924
        %v926 = vpop.f32.mrb[0].mxu0
        %927 = vmatprep.mubr.bf16.mxu0 %v621
        %928 = vmatmul.mubr.bf16.gmra.mrb[0].mxu0 %v620
        %v929 = vpop.f32.mrb[0].mxu0
        %v930 = vadd.f32 0.0, %v929
        %v931 = vpop.f32.mrb[0].mxu0
        %v932 = vpop.f32.mrb[0].mxu0
        %v933 = vadd.f32 0.0, %v932
        %v934 = vpop.f32.mrb[0].mxu0
        %935 = vmatprep.mubr.bf16.mxu0 %v624
        %936 = vmatmul.mubr.bf16.gmra.mrb[0].mxu0 %v623
        %v937 = vpop.f32.mrb[0].mxu0
        %v938 = vadd.f32 0.0, %v937
        %v939 = vpop.f32.mrb[0].mxu0
        %v940 = vpop.f32.mrb[0].mxu0
        %v941 = vadd.f32 0.0, %v940
        %v942 = vpop.f32.mrb[0].mxu0
        %943 = vmatprep.mubr.bf16.mxu0 %v627
        %944 = vmatmul.mubr.bf16.gmra.mrb[0].mxu0 %v626
        %v945 = vpop.f32.mrb[0].mxu0
        %v946 = vadd.f32 0.0, %v945
        %v947 = vpop.f32.mrb[0].mxu0
        %v948 = vpop.f32.mrb[0].mxu0
        %v949 = vadd.f32 0.0, %v948
        %v950 = vpop.f32.mrb[0].mxu0
        %951 = vmatprep.mubr.bf16.mxu0 %v630
        %952 = vmatmul.mubr.bf16.gmra.mrb[0].mxu0 %v629
        %v953 = vpop.f32.mrb[0].mxu0
        %v954 = vadd.f32 0.0, %v953
        %v955 = vpop.f32.mrb[0].mxu0
        %v956 = vpop.f32.mrb[0].mxu0
        %v957 = vadd.f32 0.0, %v956
        %v958 = vpop.f32.mrb[0].mxu0
        %959 = vmatprep.mubr.bf16.mxu0 %v633
        %960 = vmatmul.mubr.bf16.gmra.mrb[0].mxu0 %v632
        %v961 = vpop.f32.mrb[0].mxu0
        %v962 = vadd.f32 0.0, %v961
        %v963 = vpop.f32.mrb[0].mxu0
        %v964 = vpop.f32.mrb[0].mxu0
        %v965 = vadd.f32 0.0, %v964
        %v966 = vpop.f32.mrb[0].mxu0
        %967 = vmatprep.mubr.bf16.mxu0 %v636
        %968 = vmatmul.mubr.bf16.gmra.mrb[0].mxu0 %v635
        %v969 = vpop.f32.mrb[0].mxu0
        %v970 = vadd.f32 0.0, %v969
        %v971 = vpop.f32.mrb[0].mxu0
        %v972 = vpop.f32.mrb[0].mxu0
        %v973 = vadd.f32 0.0, %v972
        %v974 = vpop.f32.mrb[0].mxu0
        %975 = vmatprep.mubr.bf16.mxu0 %v639
        %976 = vmatmul.mubr.bf16.gmra.mrb[0].mxu0 %v638
        %v977 = vpop.f32.mrb[0].mxu0
        %v978 = vadd.f32 0.0, %v977
        %v979 = vpop.f32.mrb[0].mxu0
        %v980 = vpop.f32.mrb[0].mxu0
        %v981 = vadd.f32 0.0, %v980
        %v982 = vpop.f32.mrb[0].mxu0
        %983 = vmatprep.mubr.bf16.mxu0 %v642
        %984 = vmatmul.mubr.bf16.gmra.mrb[0].mxu0 %v641
        %v985 = vpop.f32.mrb[0].mxu0
        %v986 = vadd.f32 0.0, %v985
        %v987 = vpop.f32.mrb[0].mxu0
        %v988 = vpop.f32.mrb[0].mxu0
        %v989 = vadd.f32 0.0, %v988
        %v990 = vpop.f32.mrb[0].mxu0
        %991 = vmatprep.mubr.bf16.mxu0 %v645
        %992 = vmatmul.mubr.bf16.gmra.mrb[0].mxu0 %v644
        %v993 = vpop.f32.mrb[0].mxu0
        %v994 = vadd.f32 0.0, %v993
        %v995 = vpop.f32.mrb[0].mxu0
        %v996 = vpop.f32.mrb[0].mxu0
        %v997 = vadd.f32 0.0, %v996
        %v998 = vpop.f32.mrb[0].mxu0
        %999 = vdwg.mxu0
        %1000 = vmatprep.subr.bf16.mxu0 0
        %1001 = vmatpush1.bf16.msra.mxu0 %v807
        %1002 = vmatprep.subr.bf16.mxu0 0
        %1003 = vmatpush1.bf16.msra.mxu0 %v808
        %1004 = vmatprep.subr.bf16.mxu0 0
        %1005 = vmatpush1.bf16.msra.mxu0 %v809
        %1006 = vmatprep.subr.bf16.mxu0 0
        %1007 = vmatpush1.bf16.msra.mxu0 %v810
        %1008 = vmatprep.subr.bf16.mxu0 0
        %1009 = vmatpush1.bf16.msra.mxu0 %v811
        %1010 = vmatprep.subr.bf16.mxu0 0
        %1011 = vmatpush1.bf16.msra.mxu0 %v812
        %1012 = vmatprep.subr.bf16.mxu0 0
        %1013 = vmatpush1.bf16.msra.mxu0 %v813
        %1014 = vmatprep.subr.bf16.mxu0 0
        %1015 = vmatpush1.bf16.msra.mxu0 %v814
        %1016 = vmatprep.subr.bf16.mxu0 0
        %1017 = vmatpush1.bf16.msra.mxu0 0
        %1018 = vmatprep.subr.bf16.mxu0 0
        %1019 = vmatpush1.bf16.msra.mxu0 0
        %1020 = vmatprep.subr.bf16.mxu0 0
        %1021 = vmatpush1.bf16.msra.mxu0 0
        %1022 = vmatprep.subr.bf16.mxu0 0
        %1023 = vmatpush1.bf16.msra.mxu0 0
        %1024 = vmatprep.subr.bf16.mxu0 0
        %1025 = vmatpush1.bf16.msra.mxu0 0
        %1026 = vmatprep.subr.bf16.mxu0 0
        %1027 = vmatpush1.bf16.msra.mxu0 0
        %1028 = vmatprep.subr.bf16.mxu0 0
        %1029 = vmatpush1.bf16.msra.mxu0 0
        %1030 = vmatprep.subr.bf16.mxu0 0
        %1031 = vmatpush1.bf16.msra.mxu0 0
        %1032 = vmatprep.mubr.bf16.mxu0 0
        %1033 = vmatmul.mubr.bf16.gmra.mrb[0].mxu0 %v601
        %v1034 = vpop.f32.mrb[0].mxu0
        %v1035 = vadd.f32 %v874, %v1034
        %v1036 = vpop.f32.mrb[0].mxu0
        %v1037 = vpop.f32.mrb[0].mxu0
        %v1038 = vadd.f32 %v877, %v1037
        %v1039 = vpop.f32.mrb[0].mxu0
        %1040 = vmatprep.mubr.bf16.mxu0 0
        %1041 = vmatmul.mubr.bf16.gmra.mrb[0].mxu0 %v604
        %v1042 = vpop.f32.mrb[0].mxu0
        %v1043 = vadd.f32 %v882, %v1042
        %v1044 = vpop.f32.mrb[0].mxu0
        %v1045 = vpop.f32.mrb[0].mxu0
        %v1046 = vadd.f32 %v885, %v1045
        %v1047 = vpop.f32.mrb[0].mxu0
        %1048 = vmatprep.mubr.bf16.mxu0 0
        %1049 = vmatmul.mubr.bf16.gmra.mrb[0].mxu0 %v607
        %v1050 = vpop.f32.mrb[0].mxu0
        %v1051 = vadd.f32 %v890, %v1050
        %v1052 = vpop.f32.mrb[0].mxu0
        %v1053 = vpop.f32.mrb[0].mxu0
        %v1054 = vadd.f32 %v893, %v1053
        %v1055 = vpop.f32.mrb[0].mxu0
        %1056 = vmatprep.mubr.bf16.mxu0 0
        %1057 = vmatmul.mubr.bf16.gmra.mrb[0].mxu0 %v610
        %v1058 = vpop.f32.mrb[0].mxu0
        %v1059 = vadd.f32 %v898, %v1058
        %v1060 = vpop.f32.mrb[0].mxu0
        %v1061 = vpop.f32.mrb[0].mxu0
        %v1062 = vadd.f32 %v901, %v1061
        %v1063 = vpop.f32.mrb[0].mxu0
        %1064 = vmatprep.mubr.bf16.mxu0 0
        %1065 = vmatmul.mubr.bf16.gmra.mrb[0].mxu0 %v613
        %v1066 = vpop.f32.mrb[0].mxu0
        %v1067 = vadd.f32 %v906, %v1066
        %v1068 = vpop.f32.mrb[0].mxu0
        %v1069 = vpop.f32.mrb[0].mxu0
        %v1070 = vadd.f32 %v909, %v1069
        %v1071 = vpop.f32.mrb[0].mxu0
        %1072 = vmatprep.mubr.bf16.mxu0 0
        %1073 = vmatmul.mubr.bf16.gmra.mrb[0].mxu0 %v616
        %v1074 = vpop.f32.mrb[0].mxu0
        %v1075 = vadd.f32 %v914, %v1074
        %v1076 = vpop.f32.mrb[0].mxu0
        %v1077 = vpop.f32.mrb[0].mxu0
        %v1078 = vadd.f32 %v917, %v1077
        %v1079 = vpop.f32.mrb[0].mxu0
        %1080 = vmatprep.mubr.bf16.mxu0 0
        %1081 = vmatmul.mubr.bf16.gmra.mrb[0].mxu0 %v619
        %v1082 = vpop.f32.mrb[0].mxu0
        %v1083 = vadd.f32 %v922, %v1082
        %v1084 = vpop.f32.mrb[0].mxu0
        %v1085 = vpop.f32.mrb[0].mxu0
        %v1086 = vadd.f32 %v925, %v1085
        %v1087 = vpop.f32.mrb[0].mxu0
        %1088 = vmatprep.mubr.bf16.mxu0 0
        %1089 = vmatmul.mubr.bf16.gmra.mrb[0].mxu0 %v622
        %v1090 = vpop.f32.mrb[0].mxu0
        %v1091 = vadd.f32 %v930, %v1090
        %v1092 = vpop.f32.mrb[0].mxu0
        %v1093 = vpop.f32.mrb[0].mxu0
        %v1094 = vadd.f32 %v933, %v1093
        %v1095 = vpop.f32.mrb[0].mxu0
        %1096 = vmatprep.mubr.bf16.mxu0 0
        %1097 = vmatmul.mubr.bf16.gmra.mrb[0].mxu0 %v625
        %v1098 = vpop.f32.mrb[0].mxu0
        %v1099 = vadd.f32 %v938, %v1098
        %v1100 = vpop.f32.mrb[0].mxu0
        %v1101 = vpop.f32.mrb[0].mxu0
        %v1102 = vadd.f32 %v941, %v1101
        %v1103 = vpop.f32.mrb[0].mxu0
        %1104 = vmatprep.mubr.bf16.mxu0 0
        %1105 = vmatmul.mubr.bf16.gmra.mrb[0].mxu0 %v628
        %v1106 = vpop.f32.mrb[0].mxu0
        %v1107 = vadd.f32 %v946, %v1106
        %v1108 = vpop.f32.mrb[0].mxu0
        %v1109 = vpop.f32.mrb[0].mxu0
        %v1110 = vadd.f32 %v949, %v1109
        %v1111 = vpop.f32.mrb[0].mxu0
        %1112 = vmatprep.mubr.bf16.mxu0 0
        %1113 = vmatmul.mubr.bf16.gmra.mrb[0].mxu0 %v631
        %v1114 = vpop.f32.mrb[0].mxu0
        %v1115 = vadd.f32 %v954, %v1114
        %v1116 = vpop.f32.mrb[0].mxu0
        %v1117 = vpop.f32.mrb[0].mxu0
        %v1118 = vadd.f32 %v957, %v1117
        %v1119 = vpop.f32.mrb[0].mxu0
        %1120 = vmatprep.mubr.bf16.mxu0 0
        %1121 = vmatmul.mubr.bf16.gmra.mrb[0].mxu0 %v634
        %v1122 = vpop.f32.mrb[0].mxu0
        %v1123 = vadd.f32 %v962, %v1122
        %v1124 = vpop.f32.mrb[0].mxu0
        %v1125 = vpop.f32.mrb[0].mxu0
        %v1126 = vadd.f32 %v965, %v1125
        %v1127 = vpop.f32.mrb[0].mxu0
        %1128 = vmatprep.mubr.bf16.mxu0 0
        %1129 = vmatmul.mubr.bf16.gmra.mrb[0].mxu0 %v637
        %v1130 = vpop.f32.mrb[0].mxu0
        %v1131 = vadd.f32 %v970, %v1130
        %v1132 = vpop.f32.mrb[0].mxu0
        %v1133 = vpop.f32.mrb[0].mxu0
        %v1134 = vadd.f32 %v973, %v1133
        %v1135 = vpop.f32.mrb[0].mxu0
        %1136 = vmatprep.mubr.bf16.mxu0 0
        %1137 = vmatmul.mubr.bf16.gmra.mrb[0].mxu0 %v640
        %v1138 = vpop.f32.mrb[0].mxu0
        %v1139 = vadd.f32 %v978, %v1138
        %v1140 = vpop.f32.mrb[0].mxu0
        %v1141 = vpop.f32.mrb[0].mxu0
        %v1142 = vadd.f32 %v981, %v1141
        %v1143 = vpop.f32.mrb[0].mxu0
        %1144 = vmatprep.mubr.bf16.mxu0 0
        %1145 = vmatmul.mubr.bf16.gmra.mrb[0].mxu0 %v643
        %v1146 = vpop.f32.mrb[0].mxu0
        %v1147 = vadd.f32 %v986, %v1146
        %v1148 = vpop.f32.mrb[0].mxu0
        %v1149 = vpop.f32.mrb[0].mxu0
        %v1150 = vadd.f32 %v989, %v1149
        %v1151 = vpop.f32.mrb[0].mxu0
        %1152 = vmatprep.mubr.bf16.mxu0 0
        %1153 = vmatmul.mubr.bf16.gmra.mrb[0].mxu0 %v646
        %v1154 = vpop.f32.mrb[0].mxu0
        %v1155 = vadd.f32 %v994, %v1154
        %v1156 = vpop.f32.mrb[0].mxu0
        %v1157 = vpop.f32.mrb[0].mxu0
        %v1158 = vadd.f32 %v997, %v1157
        %v1159 = vpop.f32.mrb[0].mxu0
        %1160 = vdwg.mxu0
        %v1161 = vadd.f32 %v295, %v1035
        %v1162 = vadd.f32 %v296, %v1038
        %v1163 = vadd.f32 %v297, %v1043
        %v1164 = vadd.f32 %v298, %v1046
        %v1165 = vadd.f32 %v299, %v1051
        %v1166 = vadd.f32 %v300, %v1054
        %v1167 = vadd.f32 %v301, %v1059
        %v1168 = vadd.f32 %v302, %v1062
        %v1169 = vadd.f32 %v303, %v1067
        %v1170 = vadd.f32 %v304, %v1070
        %v1171 = vadd.f32 %v305, %v1075
        %v1172 = vadd.f32 %v306, %v1078
        %v1173 = vadd.f32 %v307, %v1083
        %v1174 = vadd.f32 %v308, %v1086
        %v1175 = vadd.f32 %v309, %v1091
        %v1176 = vadd.f32 %v310, %v1094
        %v1177 = vadd.f32 %v311, %v1099
        %v1178 = vadd.f32 %v312, %v1102
        %v1179 = vadd.f32 %v313, %v1107
        %v1180 = vadd.f32 %v314, %v1110
        %v1181 = vadd.f32 %v315, %v1115
        %v1182 = vadd.f32 %v316, %v1118
        %v1183 = vadd.f32 %v317, %v1123
        %v1184 = vadd.f32 %v318, %v1126
        %v1185 = vadd.f32 %v319, %v1131
        %v1186 = vadd.f32 %v320, %v1134
        %v1187 = vadd.f32 %v321, %v1139
        %v1188 = vadd.f32 %v322, %v1142
        %v1189 = vadd.f32 %v323, %v1147
        %v1190 = vadd.f32 %v324, %v1150
        %v1191 = vadd.f32 %v325, %v1155
        %v1192 = vadd.f32 %v326, %v1158
        %1193 = vst [vmem:[#allocation2] sm:$0xff] %v1161
        %1194 = vst [vmem:[#allocation2 + $0x8] sm:$0xff] %v1162
        %1195 = vst [vmem:[#allocation2 + $0x10] sm:$0xff] %v1163
        %1196 = vst [vmem:[#allocation2 + $0x18] sm:$0xff] %v1164
        %1197 = vst [vmem:[#allocation2 + $0x20] sm:$0xff] %v1165
        %1198 = vst [vmem:[#allocation2 + $0x28] sm:$0xff] %v1166
        %1199 = vst [vmem:[#allocation2 + $0x30] sm:$0xff] %v1167
        %1200 = vst [vmem:[#allocation2 + $0x38] sm:$0xff] %v1168
        %1201 = vst [vmem:[#allocation2 + $0x40] sm:$0xff] %v1169
        %1202 = vst [vmem:[#allocation2 + $0x48] sm:$0xff] %v1170
        %1203 = vst [vmem:[#allocation2 + $0x50] sm:$0xff] %v1171
        %1204 = vst [vmem:[#allocation2 + $0x58] sm:$0xff] %v1172
        %1205 = vst [vmem:[#allocation2 + $0x60] sm:$0xff] %v1173
        %1206 = vst [vmem:[#allocation2 + $0x68] sm:$0xff] %v1174
        %1207 = vst [vmem:[#allocation2 + $0x70] sm:$0xff] %v1175
        %1208 = vst [vmem:[#allocation2 + $0x78] sm:$0xff] %v1176
        %1209 = vst [vmem:[#allocation2 + $0x80] sm:$0xff] %v1177
        %1210 = vst [vmem:[#allocation2 + $0x88] sm:$0xff] %v1178
        %1211 = vst [vmem:[#allocation2 + $0x90] sm:$0xff] %v1179
        %1212 = vst [vmem:[#allocation2 + $0x98] sm:$0xff] %v1180
        %1213 = vst [vmem:[#allocation2 + $0xa0] sm:$0xff] %v1181
        %1214 = vst [vmem:[#allocation2 + $0xa8] sm:$0xff] %v1182
        %1215 = vst [vmem:[#allocation2 + $0xb0] sm:$0xff] %v1183
        %1216 = vst [vmem:[#allocation2 + $0xb8] sm:$0xff] %v1184
        %1217 = vst [vmem:[#allocation2 + $0xc0] sm:$0xff] %v1185
        %1218 = vst [vmem:[#allocation2 + $0xc8] sm:$0xff] %v1186
        %1219 = vst [vmem:[#allocation2 + $0xd0] sm:$0xff] %v1187
        %1220 = vst [vmem:[#allocation2 + $0xd8] sm:$0xff] %v1188
        %1221 = vst [vmem:[#allocation2 + $0xe0] sm:$0xff] %v1189
        %1222 = vst [vmem:[#allocation2 + $0xe8] sm:$0xff] %v1190
        %1223 = vst [vmem:[#allocation2 + $0xf0] sm:$0xff] %v1191
        %1224 = vst [vmem:[#allocation2 + $0xf8] sm:$0xff] %v1192
        // Predicated region
        $region41: #{tpu_custom_call.1} parent=27 // pred_check
          %p1225 = pneg %p259
        $region42: #{tpu_custom_call.1} parent=27 // pred_check_branch
          %1227 = sbr.rel (%p1225) target = $region44
        $region43: #{tpu_custom_call.1} parent=27 // pred_region
          %v1228 = vld [vmem:[#allocation2] sm:$0xff]
          %v1229 = vld [vmem:[#allocation2 + $0x8] sm:$0xff]
          %v1230 = vld [vmem:[#allocation2 + $0x10] sm:$0xff]
          %v1231 = vld [vmem:[#allocation2 + $0x18] sm:$0xff]
          %v1232 = vld [vmem:[#allocation2 + $0x20] sm:$0xff]
          %v1233 = vld [vmem:[#allocation2 + $0x28] sm:$0xff]
          %v1234 = vld [vmem:[#allocation2 + $0x30] sm:$0xff]
          %v1235 = vld [vmem:[#allocation2 + $0x38] sm:$0xff]
          %v1236 = vld [vmem:[#allocation2 + $0x40] sm:$0xff]
          %v1237 = vld [vmem:[#allocation2 + $0x48] sm:$0xff]
          %v1238 = vld [vmem:[#allocation2 + $0x50] sm:$0xff]
          %v1239 = vld [vmem:[#allocation2 + $0x58] sm:$0xff]
          %v1240 = vld [vmem:[#allocation2 + $0x60] sm:$0xff]
          %v1241 = vld [vmem:[#allocation2 + $0x68] sm:$0xff]
          %v1242 = vld [vmem:[#allocation2 + $0x70] sm:$0xff]
          %v1243 = vld [vmem:[#allocation2 + $0x78] sm:$0xff]
          %v1244 = vld [vmem:[#allocation2 + $0x80] sm:$0xff]
          %v1245 = vld [vmem:[#allocation2 + $0x88] sm:$0xff]
          %v1246 = vld [vmem:[#allocation2 + $0x90] sm:$0xff]
          %v1247 = vld [vmem:[#allocation2 + $0x98] sm:$0xff]
          %v1248 = vld [vmem:[#allocation2 + $0xa0] sm:$0xff]
          %v1249 = vld [vmem:[#allocation2 + $0xa8] sm:$0xff]
          %v1250 = vld [vmem:[#allocation2 + $0xb0] sm:$0xff]
          %v1251 = vld [vmem:[#allocation2 + $0xb8] sm:$0xff]
          %v1252 = vld [vmem:[#allocation2 + $0xc0] sm:$0xff]
          %v1253 = vld [vmem:[#allocation2 + $0xc8] sm:$0xff]
          %v1254 = vld [vmem:[#allocation2 + $0xd0] sm:$0xff]
          %v1255 = vld [vmem:[#allocation2 + $0xd8] sm:$0xff]
          %v1256 = vld [vmem:[#allocation2 + $0xe0] sm:$0xff]
          %v1257 = vld [vmem:[#allocation2 + $0xe8] sm:$0xff]
          %v1258 = vld [vmem:[#allocation2 + $0xf0] sm:$0xff]
          %v1259 = vld [vmem:[#allocation2 + $0xf8] sm:$0xff]
          %v1260 = vpack.c.bf16 %v1229, %v1228
          %v1261 = vpack.c.bf16 %v1231, %v1230
          %v1262 = vpack.c.bf16 %v1233, %v1232
          %v1263 = vpack.c.bf16 %v1235, %v1234
          %v1264 = vpack.c.bf16 %v1237, %v1236
          %v1265 = vpack.c.bf16 %v1239, %v1238
          %v1266 = vpack.c.bf16 %v1241, %v1240
          %v1267 = vpack.c.bf16 %v1243, %v1242
          %v1268 = vpack.c.bf16 %v1245, %v1244
          %v1269 = vpack.c.bf16 %v1247, %v1246
          %v1270 = vpack.c.bf16 %v1249, %v1248
          %v1271 = vpack.c.bf16 %v1251, %v1250
          %v1272 = vpack.c.bf16 %v1253, %v1252
          %v1273 = vpack.c.bf16 %v1255, %v1254
          %v1274 = vpack.c.bf16 %v1257, %v1256
          %v1275 = vpack.c.bf16 %v1259, %v1258
          %v1292 = vunpack.c.l.b16 %v1260
          %v1293 = vunpack.c.h.b16 %v1260
          %v1294 = vunpack.c.l.b16 %v1261
          %v1295 = vunpack.c.h.b16 %v1261
          %v1296 = vunpack.c.l.b16 %v1262
          %v1297 = vunpack.c.h.b16 %v1262
          %v1298 = vunpack.c.l.b16 %v1263
          %v1299 = vunpack.c.h.b16 %v1263
          %v1300 = vunpack.c.l.b16 %v1264
          %v1301 = vunpack.c.h.b16 %v1264
          %v1302 = vunpack.c.l.b16 %v1265
          %v1303 = vunpack.c.h.b16 %v1265
          %v1304 = vunpack.c.l.b16 %v1266
          %v1305 = vunpack.c.h.b16 %v1266
          %v1306 = vunpack.c.l.b16 %v1267
          %v1307 = vunpack.c.h.b16 %v1267
          %v1308 = vunpack.c.l.b16 %v1268
          %v1309 = vunpack.c.h.b16 %v1268
          %v1310 = vunpack.c.l.b16 %v1269
          %v1311 = vunpack.c.h.b16 %v1269
          %v1312 = vunpack.c.l.b16 %v1270
          %v1313 = vunpack.c.h.b16 %v1270
          %v1314 = vunpack.c.l.b16 %v1271
          %v1315 = vunpack.c.h.b16 %v1271
          %v1316 = vunpack.c.l.b16 %v1272
          %v1317 = vunpack.c.h.b16 %v1272
          %v1318 = vunpack.c.l.b16 %v1273
          %v1319 = vunpack.c.h.b16 %v1273
          %v1320 = vunpack.c.l.b16 %v1274
          %v1321 = vunpack.c.h.b16 %v1274
          %v1322 = vunpack.c.l.b16 %v1275
          %v1323 = vunpack.c.h.b16 %v1275
          %v1324 = vpack.c.b16 %v1292, %v1292
          %v1325 = vpack.c.b16 %v1293, %v1293
          %v1326 = vpack.c.b16 %v1294, %v1294
          %v1327 = vpack.c.b16 %v1295, %v1295
          %v1328 = vpack.c.b16 %v1296, %v1296
          %v1329 = vpack.c.b16 %v1297, %v1297
          %v1330 = vpack.c.b16 %v1298, %v1298
          %v1331 = vpack.c.b16 %v1299, %v1299
          %v1332 = vpack.c.b16 %v1300, %v1300
          %v1333 = vpack.c.b16 %v1301, %v1301
          %v1334 = vpack.c.b16 %v1302, %v1302
          %v1335 = vpack.c.b16 %v1303, %v1303
          %v1336 = vpack.c.b16 %v1304, %v1304
          %v1337 = vpack.c.b16 %v1305, %v1305
          %v1338 = vpack.c.b16 %v1306, %v1306
          %v1339 = vpack.c.b16 %v1307, %v1307
          %v1340 = vpack.c.b16 %v1308, %v1308
          %v1341 = vpack.c.b16 %v1309, %v1309
          %v1342 = vpack.c.b16 %v1310, %v1310
          %v1343 = vpack.c.b16 %v1311, %v1311
          %v1344 = vpack.c.b16 %v1312, %v1312
          %v1345 = vpack.c.b16 %v1313, %v1313
          %v1346 = vpack.c.b16 %v1314, %v1314
          %v1347 = vpack.c.b16 %v1315, %v1315
          %v1348 = vpack.c.b16 %v1316, %v1316
          %v1349 = vpack.c.b16 %v1317, %v1317
          %v1350 = vpack.c.b16 %v1318, %v1318
          %v1351 = vpack.c.b16 %v1319, %v1319
          %v1352 = vpack.c.b16 %v1320, %v1320
          %v1353 = vpack.c.b16 %v1321, %v1321
          %v1354 = vpack.c.b16 %v1322, %v1322
          %v1355 = vpack.c.b16 %v1323, %v1323
          %1388 = vst [vmem:[%s246] sm:$0xf] %v1324
          %1389 = vst [vmem:[%s246 + $0x4] sm:$0xf] %v1325
          %1390 = vst [vmem:[%s246 + $0x8] sm:$0xf] %v1326
          %1391 = vst [vmem:[%s246 + $0xc] sm:$0xf] %v1327
          %1392 = vst [vmem:[%s246 + $0x10] sm:$0xf] %v1328
          %1393 = vst [vmem:[%s246 + $0x14] sm:$0xf] %v1329
          %1394 = vst [vmem:[%s246 + $0x18] sm:$0xf] %v1330
          %1395 = vst [vmem:[%s246 + $0x1c] sm:$0xf] %v1331
          %1396 = vst [vmem:[%s246 + $0x20] sm:$0xf] %v1332
          %1397 = vst [vmem:[%s246 + $0x24] sm:$0xf] %v1333
          %1398 = vst [vmem:[%s246 + $0x28] sm:$0xf] %v1334
          %1399 = vst [vmem:[%s246 + $0x2c] sm:$0xf] %v1335
          %1400 = vst [vmem:[%s246 + $0x30] sm:$0xf] %v1336
          %1401 = vst [vmem:[%s246 + $0x34] sm:$0xf] %v1337
          %1402 = vst [vmem:[%s246 + $0x38] sm:$0xf] %v1338
          %1403 = vst [vmem:[%s246 + $0x3c] sm:$0xf] %v1339
          %1404 = vst [vmem:[%s246 + $0x40] sm:$0xf] %v1340
          %1405 = vst [vmem:[%s246 + $0x44] sm:$0xf] %v1341
          %1406 = vst [vmem:[%s246 + $0x48] sm:$0xf] %v1342
          %1407 = vst [vmem:[%s246 + $0x4c] sm:$0xf] %v1343
          %1408 = vst [vmem:[%s246 + $0x50] sm:$0xf] %v1344
          %1409 = vst [vmem:[%s246 + $0x54] sm:$0xf] %v1345
          %1410 = vst [vmem:[%s246 + $0x58] sm:$0xf] %v1346
          %1411 = vst [vmem:[%s246 + $0x5c] sm:$0xf] %v1347
          %1412 = vst [vmem:[%s246 + $0x60] sm:$0xf] %v1348
          %1413 = vst [vmem:[%s246 + $0x64] sm:$0xf] %v1349
          %1414 = vst [vmem:[%s246 + $0x68] sm:$0xf] %v1350
          %1415 = vst [vmem:[%s246 + $0x6c] sm:$0xf] %v1351
          %1416 = vst [vmem:[%s246 + $0x70] sm:$0xf] %v1352
          %1417 = vst [vmem:[%s246 + $0x74] sm:$0xf] %v1353
          %1418 = vst [vmem:[%s246 + $0x78] sm:$0xf] %v1354
          %1419 = vst [vmem:[%s246 + $0x7c] sm:$0xf] %v1355
          %v1420 = vadd.f32 %v1228, %v1229
          %v1421 = vadd.f32 %v1420, %v1230
          %v1422 = vadd.f32 %v1421, %v1231
          %v1423 = vadd.f32 %v1422, %v1232
          %v1424 = vadd.f32 %v1423, %v1233
          %v1425 = vadd.f32 %v1424, %v1234
          %v1426 = vadd.f32 %v1425, %v1235
          %v1427 = vadd.f32 %v1426, %v1236
          %v1428 = vadd.f32 %v1427, %v1237
          %v1429 = vadd.f32 %v1428, %v1238
          %v1430 = vadd.f32 %v1429, %v1239
          %v1431 = vadd.f32 %v1430, %v1240
          %v1432 = vadd.f32 %v1431, %v1241
          %v1433 = vadd.f32 %v1432, %v1242
          %v1434 = vadd.f32 %v1433, %v1243
          %v1435 = vadd.f32 %v1434, %v1244
          %v1436 = vadd.f32 %v1435, %v1245
          %v1437 = vadd.f32 %v1436, %v1246
          %v1438 = vadd.f32 %v1437, %v1247
          %v1439 = vadd.f32 %v1438, %v1248
          %v1440 = vadd.f32 %v1439, %v1249
          %v1441 = vadd.f32 %v1440, %v1250
          %v1442 = vadd.f32 %v1441, %v1251
          %v1443 = vadd.f32 %v1442, %v1252
          %v1444 = vadd.f32 %v1443, %v1253
          %v1445 = vadd.f32 %v1444, %v1254
          %v1446 = vadd.f32 %v1445, %v1255
          %v1447 = vadd.f32 %v1446, %v1256
          %v1448 = vadd.f32 %v1447, %v1257
          %v1449 = vadd.f32 %v1448, %v1258
          %v1450 = vadd.f32 %v1449, %v1259
          %v1451 = vrot.slane %v1450, 4
          %v1452 = vadd.f32 %v1450, %v1451
          %v1453 = vrot.slane %v1452, 2
          %v1454 = vadd.f32 %v1452, %v1453
          %v1455 = vrot.slane %v1454, 1
          %v1456 = vadd.f32 %v1454, %v1455
          %v1457 = vmul.f32 %v1228, %v1228
          %v1458 = vmul.f32 %v1229, %v1229
          %v1459 = vmul.f32 %v1230, %v1230
          %v1460 = vmul.f32 %v1231, %v1231
          %v1461 = vmul.f32 %v1232, %v1232
          %v1462 = vmul.f32 %v1233, %v1233
          %v1463 = vmul.f32 %v1234, %v1234
          %v1464 = vmul.f32 %v1235, %v1235
          %v1465 = vmul.f32 %v1236, %v1236
          %v1466 = vmul.f32 %v1237, %v1237
          %v1467 = vmul.f32 %v1238, %v1238
          %v1468 = vmul.f32 %v1239, %v1239
          %v1469 = vmul.f32 %v1240, %v1240
          %v1470 = vmul.f32 %v1241, %v1241
          %v1471 = vmul.f32 %v1242, %v1242
          %v1472 = vmul.f32 %v1243, %v1243
          %v1473 = vmul.f32 %v1244, %v1244
          %v1474 = vmul.f32 %v1245, %v1245
          %v1475 = vmul.f32 %v1246, %v1246
          %v1476 = vmul.f32 %v1247, %v1247
          %v1477 = vmul.f32 %v1248, %v1248
          %v1478 = vmul.f32 %v1249, %v1249
          %v1479 = vmul.f32 %v1250, %v1250
          %v1480 = vmul.f32 %v1251, %v1251
          %v1481 = vmul.f32 %v1252, %v1252
          %v1482 = vmul.f32 %v1253, %v1253
          %v1483 = vmul.f32 %v1254, %v1254
          %v1484 = vmul.f32 %v1255, %v1255
          %v1485 = vmul.f32 %v1256, %v1256
          %v1486 = vmul.f32 %v1257, %v1257
          %v1487 = vmul.f32 %v1258, %v1258
          %v1488 = vmul.f32 %v1259, %v1259
          %v1489 = vadd.f32 %v1457, %v1458
          %v1490 = vadd.f32 %v1489, %v1459
          %v1491 = vadd.f32 %v1490, %v1460
          %v1492 = vadd.f32 %v1491, %v1461
          %v1493 = vadd.f32 %v1492, %v1462
          %v1494 = vadd.f32 %v1493, %v1463
          %v1495 = vadd.f32 %v1494, %v1464
          %v1496 = vadd.f32 %v1495, %v1465
          %v1497 = vadd.f32 %v1496, %v1466
          %v1498 = vadd.f32 %v1497, %v1467
          %v1499 = vadd.f32 %v1498, %v1468
          %v1500 = vadd.f32 %v1499, %v1469
          %v1501 = vadd.f32 %v1500, %v1470
          %v1502 = vadd.f32 %v1501, %v1471
          %v1503 = vadd.f32 %v1502, %v1472
          %v1504 = vadd.f32 %v1503, %v1473
          %v1505 = vadd.f32 %v1504, %v1474
          %v1506 = vadd.f32 %v1505, %v1475
          %v1507 = vadd.f32 %v1506, %v1476
          %v1508 = vadd.f32 %v1507, %v1477
          %v1509 = vadd.f32 %v1508, %v1478
          %v1510 = vadd.f32 %v1509, %v1479
          %v1511 = vadd.f32 %v1510, %v1480
          %v1512 = vadd.f32 %v1511, %v1481
          %v1513 = vadd.f32 %v1512, %v1482
          %v1514 = vadd.f32 %v1513, %v1483
          %v1515 = vadd.f32 %v1514, %v1484
          %v1516 = vadd.f32 %v1515, %v1485
          %v1517 = vadd.f32 %v1516, %v1486
          %v1518 = vadd.f32 %v1517, %v1487
          %v1519 = vadd.f32 %v1518, %v1488
          %v1520 = vrot.slane %v1519, 4
          %v1521 = vadd.f32 %v1519, %v1520
          %v1522 = vrot.slane %v1521, 2
          %v1523 = vadd.f32 %v1521, %v1522
          %v1524 = vrot.slane %v1523, 1
          %v1525 = vadd.f32 %v1523, %v1524
          %vm1526 = vcmask 1040384
          %v1527 = vsel %vm1526, %v1456, %v1525
          %vm1528 = vcmask 1041408
          %v1529 = vsel %vm1528, %v1527, 0.0
          %1530 = vst [vmem:[%s253] sm:$0xff] %v1529
        $region44: #{tpu_custom_call.1} parent=27 // pred_fallthru
          _
        %s1531 = sand.u32 %s110, 1
        %s1532 = scalar_lea.sflag [#allocation5], %s1531
        %s1533 = sand.u32 %s110, 1
        %s1534 = smul.addr %s1533, 128
        %s1535 = scalar_lea.vmem [#allocation8], %s1534
        %s1536 = sand.u32 %s138, 1
        %s1537 = scalar_lea.sflag [#allocation10], %s1536
        %s1538 = sand.u32 %s138, 1
        %s1539 = smul.addr %s1538, 8
        %s1540 = scalar_lea.vmem [#allocation9], %s1539
        // Predicated region
        $region45: #{tpu_custom_call.1} parent=27 // pred_check
          %p1541 = pneg %p120
        $region46: #{tpu_custom_call.1} parent=27 // pred_check_branch
          %1543 = sbr.rel (%p1541) target = $region48
        $region47: #{tpu_custom_call.1} parent=27 // pred_region
          %s1544 = smul.u32 32, %s30
          %s1546 = ssub.s32 2048, 2048
          %1547 = vsyncadd %s1532, %s1546
          %s1548 = sadd.s32 %s31, %s1544
          %s1549 = smul.addr %s1548, 64
          %s1550 = scalar_lea.hbm %s2, %s1549
          %s1551 = sshll.u32 %s1535, 4
          %s1552 = int_to_ptr.vmem [resolvable:$true] %s1551
          %1557 = dma.vmem_to_hbm [thread:$0]  %s1552, 2048, %s1550, %s1532, 64, 64, 4
        $region48: #{tpu_custom_call.1} parent=27 // pred_fallthru
          _
        // Predicated region
        $region49: #{tpu_custom_call.1} parent=27 // pred_check
          %p1558 = pneg %p148
        $region50: #{tpu_custom_call.1} parent=27 // pred_check_branch
          %1560 = sbr.rel (%p1558) target = $region52
        $region51: #{tpu_custom_call.1} parent=27 // pred_region
          %s1562 = ssub.s32 128, 128
          %1563 = vsyncadd %s1537, %s1562
          %s1564 = sadd.s32 %s31, %s30
          %s1565 = smul.addr %s1564, 128
          %s1566 = scalar_lea.hbm %s3, %s1565
          %s1568 = sshll.u32 %s1540, 4
          %s1569 = int_to_ptr.vmem [resolvable:$true] %s1568
          %1571 = dma.vmem_to_hbm [thread:$0]  %s1569, 128, %s1566, %s1537
        $region52: #{tpu_custom_call.1} parent=27 // pred_fallthru
          _
      $region28: #{tpu_custom_call.1} parent=5 // pred_fallthru
        _
      %p1572 = scmp.le.s32.totalorder 2, %s20
      // Predicated region
      $region53: #{tpu_custom_call.1} parent=5 // pred_check
        %p1573 = pneg %p1572
      $region54: #{tpu_custom_call.1} parent=5 // pred_check_branch
        %1575 = sbr.rel (%p1573) target = $region56
      $region55: #{tpu_custom_call.1} parent=5 // pred_region
        %s1576 = ssub.s32 %s20, 2
        // Predicated region
        $region57: #{tpu_custom_call.1} parent=55 // pred_check
          %p1577 = pneg %p126
        $region58: #{tpu_custom_call.1} parent=55 // pred_check_branch
          %1579 = sbr.rel (%p1577) target = $region60
        $region59: #{tpu_custom_call.1} parent=55 // pred_region
          %s1580 = sand.u32 %s111, 1
          %s1581 = scalar_lea.sflag [#allocation5], %s1580
          %s1582 = sand.u32 %s111, 1
          %s1583 = smul.addr %s1582, 128
          %s1584 = scalar_lea.vmem [#allocation8], %s1583
          %1585 = dma.done %s1581, 2048
        $region60: #{tpu_custom_call.1} parent=55 // pred_fallthru
          _
        // Predicated region
        $region61: #{tpu_custom_call.1} parent=55 // pred_check
          %p1586 = pneg %p154
        $region62: #{tpu_custom_call.1} parent=55 // pred_check_branch
          %1588 = sbr.rel (%p1586) target = $region64
        $region63: #{tpu_custom_call.1} parent=55 // pred_region
          %s1589 = sand.u32 %s139, 1
          %s1590 = scalar_lea.sflag [#allocation10], %s1589
          %s1591 = sand.u32 %s139, 1
          %s1592 = smul.addr %s1591, 8
          %s1593 = scalar_lea.vmem [#allocation9], %s1592
          %1594 = dma.done %s1590, 128
        $region64: #{tpu_custom_call.1} parent=55 // pred_fallthru
          _
      $region56: #{tpu_custom_call.1} parent=5 // pred_fallthru
        _
    $region6: #{tpu_custom_call.1} parent=1 // loop_footer
      %s24 = sadd.s32 1, %s20
    $region7: #{tpu_custom_call.1} parent=1 // loop_footer_branch
      %19 = sbr.rel target = $region3
    $region8: #{tpu_custom_call.1} parent=1 // loop_exit
      _
    %1595 = vsyncpa [#allocation4], 1
    %s1596 = scalar_lea.sflag [#allocation4], 1
    %1597 = vsyncpa %s1596, 1
    %1598 = vsyncpa [#allocation7], 1
    %1599 = vsyncpa [#allocation5], 1
    %s1600 = scalar_lea.sflag [#allocation5], 1
    %1601 = vsyncpa %s1600, 1
    %1602 = vsyncpa [#allocation10], 1
    %s1603 = scalar_lea.sflag [#allocation10], 1
    %1604 = vsyncpa %s1603, 1

</llo_original>
